<compile_context>
chip_gen: v5e
topology: v5e:2x2
jax: 0.10.0
libtpu: 0.0.40
codegen_flags: <defaults>
</compile_context>

<pallas_src>
import functools

import jax
import jax.numpy as jnp
from jax.experimental import pallas as pl
from jax.experimental.pallas import tpu as pltpu


def _erf_f32(x):
    """Abramowitz & Stegun 7.1.26 erf, |err| <= 1.5e-7 (~f32 eps).

    Only uses exp + basic arithmetic so it lowers on every TPU generation while
    keeping PyTorch's exact-erf GELU semantics to f32 precision."""
    a1, a2, a3, a4, a5 = (0.254829592, -0.284496736, 1.421413741,
                          -1.453152027, 1.061405429)
    p = 0.3275911
    ax = jnp.abs(x)
    t = 1.0 / (1.0 + p * ax)
    poly = ((((a5 * t + a4) * t + a3) * t + a2) * t + a1) * t
    y = 1.0 - poly * jnp.exp(-ax * ax)
    return jnp.where(x >= 0.0, y, -y)


def _gelu_exact(x):
    return 0.5 * x * (1.0 + _erf_f32(x * 0.7071067811865476))


def _conv_gelu_pool_kernel(x_ref, w_ref, b_ref, pool_ref, o_ref, *,
                           kh, kw, stride, Ho, Wo, rows_per_step,
                           matmul_dtype, approximate_gelu):
    """Fused Conv2d + GELU + AvgPool((1, pool)) for one (image, row-block).

    x_ref:    (1, Cin, H, W)  full image, resident across the row-block axis
    w_ref:    (Cout, K)       K = kh*kw*Cin, bf16, resident
    b_ref:    (Cout, 1)       f32, resident
    pool_ref: (Wo, Wp)        f32 averaging matrix, resident
    o_ref:    (1, rows_per_step, Cout, Wp)
    """
    rb = pl.program_id(1)
    w = w_ref[...]
    pool_mat = pool_ref[...]
    cout = w.shape[0]
    # Hoist the bias lane-broadcast out of the row loop (broadcasts aren't CSEd).
    bias = jnp.broadcast_to(b_ref[...], (cout, Wo)).astype(jnp.float32)

    for rr in range(rows_per_step):          # static unroll: bounds live ranges
        # Clamp so the padded tail of the last row block recomputes row Ho-1
        # (its output is sliced away by the wrapper).
        ho = jnp.minimum(rb * rows_per_step + rr, Ho - 1)
        r0 = ho * stride
        # (Cin, kh, W) strip of the resident image; dynamic sublane start.
        strip = x_ref[0, :, pl.ds(r0, kh), :]
        # In-kernel im2col: kh*kw statically shifted lane slices; feature order
        # (i, j, c) matches the (Cout, kh, kw, Cin) flattening of the weights.
        cols = []
        for i in range(kh):
            for j in range(kw):
                cols.append(strip[:, i, j:j + (Wo - 1) * stride + 1:stride])
        patch = jnp.concatenate(cols, axis=0).astype(matmul_dtype)   # (K, Wo)
        y = jnp.dot(w, patch, preferred_element_type=jnp.float32)    # (Cout, Wo)
        if approximate_gelu:
            g = jax.nn.gelu(y + bias, approximate=True)              # tanh GELU
        else:
            g = _gelu_exact(y + bias)                                # exact-erf GELU
        # AvgPool2d((1, pool), (1, pool)) as a tiny f32 matmul; zero columns of
        # pool_mat implement the floor-mode tail crop.
        pooled = jnp.dot(g, pool_mat, preferred_element_type=jnp.float32)
        o_ref[0, rr] = pooled.astype(o_ref.dtype)


def basic_conv_block(x, weight, bias, *, stride, pool_kernel,
                     rows_per_step=8, matmul_dtype=jnp.bfloat16,
                     approximate_gelu=False):
    """x: (N, Cin, H, W) f32, weight: (Cout, Cin, kh, kw), bias: (Cout,).
    Returns (N, Cout, Ho, Wo // pool_kernel), matching
    AvgPool2d((1, pool), (1, pool))(GELU(Conv2d(stride=stride, padding=0)(x)))."""
    N, Cin, H, W = x.shape
    Cout, Cin_w, kh, kw = weight.shape
    assert Cin_w == Cin
    Ho = (H - kh) // stride + 1
    Wo = (W - kw) // stride + 1
    Wp = Wo // pool_kernel
    assert Wp >= 1, "pool_kernel larger than conv output width"
    K = kh * kw * Cin

    # Row-block tiling of the Ho axis (tail rows are clamped in-kernel).
    tr = max(1, min(rows_per_step, Ho))
    n_rb = (Ho + tr - 1) // tr
    # v7x: guarantee >= 2 grid steps so both TensorCores get work.
    if N * n_rb < 2 and Ho >= 2:
        tr = (Ho + 1) // 2
        n_rb = (Ho + tr - 1) // tr
    Ho_pad = n_rb * tr

    # (Cout, K) weights in (i, j, c) feature order; bf16 feeds the MXU natively.
    w_mat = jnp.transpose(weight, (0, 2, 3, 1)).reshape(Cout, K).astype(matmul_dtype)
    b_mat = bias.reshape(Cout, 1).astype(jnp.float32)
    # Averaging matrix: out[:, p] = mean(in[:, p*pool : (p+1)*pool]).
    pool_mat = ((jnp.arange(Wo)[:, None] // pool_kernel)
                == jnp.arange(Wp)[None, :]).astype(jnp.float32) / pool_kernel

    # VMEM: double-buffered image + output blocks + small resident operands.
    img_bytes = Cin * H * W * x.dtype.itemsize
    out_bytes = tr * Cout * Wp * 4
    resident = Cout * K * 2 + Cout * 4 + Wo * Wp * 4
    vmem_limit = int(min(48 * 2 ** 20,
                         max(4 * 2 ** 20,
                             4 * (2 * img_bytes + 2 * out_bytes + 2 * resident))))

    kern = functools.partial(
        _conv_gelu_pool_kernel, kh=kh, kw=kw, stride=stride, Ho=Ho, Wo=Wo,
        rows_per_step=tr, matmul_dtype=matmul_dtype,
        approximate_gelu=approximate_gelu)

    # Row-block axis is "arbitrary" so the resident image block is never
    # re-fetched within an image; when N == 1 make it "parallel" instead so v7x
    # can still split the grid across its two TensorCores.
    row_sem = "parallel" if N == 1 else "arbitrary"

    out = pl.pallas_call(
        kern,
        out_shape=jax.ShapeDtypeStruct((N, Ho_pad, Cout, Wp), x.dtype),
        grid=(N, n_rb),
        in_specs=[
            # Whole image; constant block index along the row-block axis, so the
            # pipeline keeps it resident and only re-DMAs when n changes
            # (activations are read ~1x from HBM: im2col is fused in-kernel).
            pl.BlockSpec((1, Cin, H, W), lambda n, rb: (n, 0, 0, 0)),
            pl.BlockSpec((Cout, K), lambda n, rb: (0, 0)),   # resident
            pl.BlockSpec((Cout, 1), lambda n, rb: (0, 0)),   # resident
            pl.BlockSpec((Wo, Wp), lambda n, rb: (0, 0)),    # resident
        ],
        out_specs=pl.BlockSpec((1, tr, Cout, Wp), lambda n, rb: (n, rb, 0, 0)),
        compiler_params=pltpu.CompilerParams(
            dimension_semantics=("parallel", row_sem),
            vmem_limit_bytes=vmem_limit),
    )(x, w_mat, b_mat, pool_mat)

    out = out[:, :Ho]                                # drop padded tail rows
    return jnp.transpose(out, (0, 2, 1, 3))          # NCHW: (N, Cout, Ho, Wp)


def _reference(x, weight, bias, *, stride, pool_kernel):
    """Pure-JAX f32 reference mirroring the PyTorch forward."""
    y = jax.lax.conv_general_dilated(
        x, weight, window_strides=(stride, stride), padding="VALID",
        dimension_numbers=("NCHW", "OIHW", "NCHW"))
    y = y + bias.reshape(1, -1, 1, 1)
    y = jax.nn.gelu(y, approximate=False)
    N, C, Ho, Wo = y.shape
    Wp = Wo // pool_kernel
    y = y[:, :, :, :Wp * pool_kernel].reshape(N, C, Ho, Wp, pool_kernel)
    return jnp.mean(y, axis=-1)


if __name__ == "__main__":
    # Module hyper-params (small, consistent with BasicConvBlock.__init__)
    in_channels, out_channels = 4, 8
    kernel, stride, pool_kernel = 3, 1, 2
    N, H, W = 2, 16, 16

    key = jax.random.PRNGKey(0)
    kx, kwt, kb = jax.random.split(key, 3)
    x = jax.random.normal(kx, (N, in_channels, H, W), dtype=jnp.float32)
    weight = (jax.random.normal(
        kwt, (out_channels, in_channels, kernel, kernel), dtype=jnp.float32) * 0.1)
    bias = jax.random.normal(kb, (out_channels,), dtype=jnp.float32) * 0.1

    out = basic_conv_block(x, weight, bias, stride=stride,
                           pool_kernel=pool_kernel, rows_per_step=8)
    out = jax.block_until_ready(out)

    ref = _reference(x, weight, bias, stride=stride, pool_kernel=pool_kernel)
    assert out.shape == ref.shape, (out.shape, ref.shape)
    # bf16 matmul operands (f32 accumulate) -> tolerance loosened vs pure f32.
    max_err = float(jnp.max(jnp.abs(out - ref)))
    assert jnp.allclose(out, ref, atol=2e-2, rtol=2e-2), max_err

    print("KERNEL_OK")
</pallas_src>

<mosaic_0001>
module attributes {stable_mosaic.version = 11 : i64} {
  func.func @_conv_gelu_pool_kernel(%arg0: i32, %arg1: i32, %arg2: memref<1x4x16x16xf32, #tpu.memory_space<vmem>>, %arg3: memref<8x36xbf16, #tpu.memory_space<vmem>>, %arg4: memref<8x1xf32, #tpu.memory_space<vmem>>, %arg5: memref<14x7xf32, #tpu.memory_space<vmem>>, %arg6: memref<1x8x8x7xf32, #tpu.memory_space<vmem>>) attributes {dimension_semantics = [#tpu.dimension_semantics<parallel>, #tpu.dimension_semantics<arbitrary>], iteration_bounds = array<i64: 2, 2>, scalar_prefetch = 0 : i64, scratch_operands = 0 : i64, tpu.core_type = #tpu.core_type<tc>, window_params = [{transform_indices = @transform_0, window_bounds = array<i64: 1, 4, 16, 16>}, {pipeline_mode = #tpu.pipeline_mode<synchronous>, transform_indices = @transform_1, window_bounds = array<i64: 8, 36>}, {pipeline_mode = #tpu.pipeline_mode<synchronous>, transform_indices = @transform_2, window_bounds = array<i64: 8, 1>}, {pipeline_mode = #tpu.pipeline_mode<synchronous>, transform_indices = @transform_3, window_bounds = array<i64: 14, 7>}, {transform_indices = @transform_4, window_bounds = array<i64: 1, 8, 8, 7>}]} {
    %c0 = arith.constant 0 : index
    %c0_0 = arith.constant 0 : index
    %0 = vector.load %arg3[%c0, %c0_0] : memref<8x36xbf16, #tpu.memory_space<vmem>>, vector<8x36xbf16>
    %c0_1 = arith.constant 0 : index
    %c0_2 = arith.constant 0 : index
    %1 = vector.load %arg5[%c0_1, %c0_2] : memref<14x7xf32, #tpu.memory_space<vmem>>, vector<14x7xf32>
    %c0_3 = arith.constant 0 : index
    %c0_4 = arith.constant 0 : index
    %2 = vector.load %arg4[%c0_3, %c0_4] : memref<8x1xf32, #tpu.memory_space<vmem>>, vector<8x1xf32>
    %3 = vector.shape_cast %2 : vector<8x1xf32> to vector<8x1xf32>
    %4 = vector.broadcast %3 : vector<8x1xf32> to vector<8x14xf32>
    %c8_i32 = arith.constant 8 : i32
    %5 = arith.muli %arg1, %c8_i32 : i32
    %c0_i32 = arith.constant 0 : i32
    %6 = arith.addi %5, %c0_i32 : i32
    %c13_i32 = arith.constant 13 : i32
    %7 = arith.minsi %6, %c13_i32 : i32
    %c1_i32 = arith.constant 1 : i32
    %8 = arith.muli %7, %c1_i32 : i32
    %c0_5 = arith.constant 0 : index
    %c0_6 = arith.constant 0 : index
    %9 = arith.index_cast %8 : i32 to index
    %c0_7 = arith.constant 0 : index
    %10 = vector.load %arg2[%c0_5, %c0_6, %9, %c0_7] : memref<1x4x16x16xf32, #tpu.memory_space<vmem>>, vector<1x4x3x16xf32>
    %11 = vector.shape_cast %10 : vector<1x4x3x16xf32> to vector<4x3x16xf32>
    %12 = vector.extract_strided_slice %11 {offsets = [0, 0, 0], sizes = [4, 1, 14], strides = [1, 1, 1]} : vector<4x3x16xf32> to vector<4x1x14xf32>
    %13 = vector.shape_cast %12 : vector<4x1x14xf32> to vector<4x14xf32>
    %14 = vector.extract_strided_slice %11 {offsets = [0, 0, 1], sizes = [4, 1, 14], strides = [1, 1, 1]} : vector<4x3x16xf32> to vector<4x1x14xf32>
    %15 = vector.shape_cast %14 : vector<4x1x14xf32> to vector<4x14xf32>
    %16 = vector.extract_strided_slice %11 {offsets = [0, 0, 2], sizes = [4, 1, 14], strides = [1, 1, 1]} : vector<4x3x16xf32> to vector<4x1x14xf32>
    %17 = vector.shape_cast %16 : vector<4x1x14xf32> to vector<4x14xf32>
    %18 = vector.extract_strided_slice %11 {offsets = [0, 1, 0], sizes = [4, 1, 14], strides = [1, 1, 1]} : vector<4x3x16xf32> to vector<4x1x14xf32>
    %19 = vector.shape_cast %18 : vector<4x1x14xf32> to vector<4x14xf32>
    %20 = vector.extract_strided_slice %11 {offsets = [0, 1, 1], sizes = [4, 1, 14], strides = [1, 1, 1]} : vector<4x3x16xf32> to vector<4x1x14xf32>
    %21 = vector.shape_cast %20 : vector<4x1x14xf32> to vector<4x14xf32>
    %22 = vector.extract_strided_slice %11 {offsets = [0, 1, 2], sizes = [4, 1, 14], strides = [1, 1, 1]} : vector<4x3x16xf32> to vector<4x1x14xf32>
    %23 = vector.shape_cast %22 : vector<4x1x14xf32> to vector<4x14xf32>
    %24 = vector.extract_strided_slice %11 {offsets = [0, 2, 0], sizes = [4, 1, 14], strides = [1, 1, 1]} : vector<4x3x16xf32> to vector<4x1x14xf32>
    %25 = vector.shape_cast %24 : vector<4x1x14xf32> to vector<4x14xf32>
    %26 = vector.extract_strided_slice %11 {offsets = [0, 2, 1], sizes = [4, 1, 14], strides = [1, 1, 1]} : vector<4x3x16xf32> to vector<4x1x14xf32>
    %27 = vector.shape_cast %26 : vector<4x1x14xf32> to vector<4x14xf32>
    %28 = vector.extract_strided_slice %11 {offsets = [0, 2, 2], sizes = [4, 1, 14], strides = [1, 1, 1]} : vector<4x3x16xf32> to vector<4x1x14xf32>
    %29 = vector.shape_cast %28 : vector<4x1x14xf32> to vector<4x14xf32>
    %30 = tpu.concatenate %13, %15, %17, %19, %21, %23, %25, %27, %29 in 0 : vector<4x14xf32>, vector<4x14xf32>, vector<4x14xf32>, vector<4x14xf32>, vector<4x14xf32>, vector<4x14xf32>, vector<4x14xf32>, vector<4x14xf32>, vector<4x14xf32> -> vector<36x14xf32>
    %31 = arith.truncf %30 : vector<36x14xf32> to vector<36x14xbf16>
    %cst = arith.constant dense<0.000000e+00> : vector<8x14xf32>
    %32 = tpu.matmul %0, %31, %cst {dimension_numbers = #tpu.dot_dimension_numbers<[1], [0], [0], [1], [0, 0, 1, 1], [], []>} : vector<8x36xbf16>, vector<36x14xbf16>, vector<8x14xf32> -> vector<8x14xf32>
    %33 = arith.addf %32, %4 : vector<8x14xf32>
    %cst_8 = arith.constant 5.000000e-01 : f32
    %34 = vector.broadcast %cst_8 : f32 to vector<8x14xf32>
    %35 = arith.mulf %34, %33 : vector<8x14xf32>
    %cst_9 = arith.constant 0.707106769 : f32
    %36 = vector.broadcast %cst_9 : f32 to vector<8x14xf32>
    %37 = arith.mulf %33, %36 : vector<8x14xf32>
    %38 = math.absf %37 : vector<8x14xf32>
    %cst_10 = arith.constant 0.327591091 : f32
    %39 = vector.broadcast %cst_10 : f32 to vector<8x14xf32>
    %40 = arith.mulf %39, %38 : vector<8x14xf32>
    %cst_11 = arith.constant 1.000000e+00 : f32
    %41 = vector.broadcast %cst_11 : f32 to vector<8x14xf32>
    %42 = arith.addf %41, %40 : vector<8x14xf32>
    %cst_12 = arith.constant 1.000000e+00 : f32
    %43 = vector.broadcast %cst_12 : f32 to vector<8x14xf32>
    %44 = arith.divf %43, %42 : vector<8x14xf32>
    %cst_13 = arith.constant 1.06140542 : f32
    %45 = vector.broadcast %cst_13 : f32 to vector<8x14xf32>
    %46 = arith.mulf %45, %44 : vector<8x14xf32>
    %cst_14 = arith.constant -1.45315206 : f32
    %47 = vector.broadcast %cst_14 : f32 to vector<8x14xf32>
    %48 = arith.addf %46, %47 : vector<8x14xf32>
    %49 = arith.mulf %48, %44 : vector<8x14xf32>
    %cst_15 = arith.constant 1.42141378 : f32
    %50 = vector.broadcast %cst_15 : f32 to vector<8x14xf32>
    %51 = arith.addf %49, %50 : vector<8x14xf32>
    %52 = arith.mulf %51, %44 : vector<8x14xf32>
    %cst_16 = arith.constant -0.284496725 : f32
    %53 = vector.broadcast %cst_16 : f32 to vector<8x14xf32>
    %54 = arith.addf %52, %53 : vector<8x14xf32>
    %55 = arith.mulf %54, %44 : vector<8x14xf32>
    %cst_17 = arith.constant 0.254829586 : f32
    %56 = vector.broadcast %cst_17 : f32 to vector<8x14xf32>
    %57 = arith.addf %55, %56 : vector<8x14xf32>
    %58 = arith.mulf %57, %44 : vector<8x14xf32>
    %cst_18 = arith.constant 0.000000e+00 : f32
    %59 = vector.broadcast %cst_18 : f32 to vector<8x14xf32>
    %60 = arith.subf %59, %38 : vector<8x14xf32>
    %61 = arith.mulf %60, %38 : vector<8x14xf32>
    %62 = math.exp %61 : vector<8x14xf32>
    %63 = arith.mulf %58, %62 : vector<8x14xf32>
    %cst_19 = arith.constant 1.000000e+00 : f32
    %64 = vector.broadcast %cst_19 : f32 to vector<8x14xf32>
    %65 = arith.subf %64, %63 : vector<8x14xf32>
    %cst_20 = arith.constant 0.000000e+00 : f32
    %66 = vector.broadcast %cst_20 : f32 to vector<8x14xf32>
    %67 = arith.cmpf oge, %37, %66 : vector<8x14xf32>
    %cst_21 = arith.constant 0.000000e+00 : f32
    %68 = vector.broadcast %cst_21 : f32 to vector<8x14xf32>
    %69 = arith.subf %68, %65 : vector<8x14xf32>
    %70 = arith.select %67, %65, %69 : vector<8x14xi1>, vector<8x14xf32>
    %cst_22 = arith.constant 1.000000e+00 : f32
    %71 = vector.broadcast %cst_22 : f32 to vector<8x14xf32>
    %72 = arith.addf %71, %70 : vector<8x14xf32>
    %73 = arith.mulf %35, %72 : vector<8x14xf32>
    %cst_23 = arith.constant dense<0.000000e+00> : vector<8x7xf32>
    %74 = tpu.matmul %73, %1, %cst_23 {dimension_numbers = #tpu.dot_dimension_numbers<[1], [0], [0], [1], [0, 0, 1, 1], [], []>} : vector<8x14xf32>, vector<14x7xf32>, vector<8x7xf32> -> vector<8x7xf32>
    %c0_24 = arith.constant 0 : index
    %c0_25 = arith.constant 0 : index
    %c0_26 = arith.constant 0 : index
    %c0_27 = arith.constant 0 : index
    %75 = vector.load %arg6[%c0_24, %c0_25, %c0_26, %c0_27] : memref<1x8x8x7xf32, #tpu.memory_space<vmem>>, vector<1x1x8x7xf32>
    %76 = vector.shape_cast %75 : vector<1x1x8x7xf32> to vector<8x7xf32>
    %77 = vector.shape_cast %74 : vector<8x7xf32> to vector<1x1x8x7xf32>
    tpu.vector_store %arg6[%c0_24, %c0_25, %c0_26, %c0_27], %77 {strides = array<i32>} : memref<1x8x8x7xf32, #tpu.memory_space<vmem>>, vector<1x1x8x7xf32>,
    %c8_i32_28 = arith.constant 8 : i32
    %78 = arith.muli %arg1, %c8_i32_28 : i32
    %c1_i32_29 = arith.constant 1 : i32
    %79 = arith.addi %78, %c1_i32_29 : i32
    %c13_i32_30 = arith.constant 13 : i32
    %80 = arith.minsi %79, %c13_i32_30 : i32
    %c1_i32_31 = arith.constant 1 : i32
    %81 = arith.muli %80, %c1_i32_31 : i32
    %c0_32 = arith.constant 0 : index
    %c0_33 = arith.constant 0 : index
    %82 = arith.index_cast %81 : i32 to index
    %c0_34 = arith.constant 0 : index
    %83 = vector.load %arg2[%c0_32, %c0_33, %82, %c0_34] : memref<1x4x16x16xf32, #tpu.memory_space<vmem>>, vector<1x4x3x16xf32>
    %84 = vector.shape_cast %83 : vector<1x4x3x16xf32> to vector<4x3x16xf32>
    %85 = vector.extract_strided_slice %84 {offsets = [0, 0, 0], sizes = [4, 1, 14], strides = [1, 1, 1]} : vector<4x3x16xf32> to vector<4x1x14xf32>
    %86 = vector.shape_cast %85 : vector<4x1x14xf32> to vector<4x14xf32>
    %87 = vector.extract_strided_slice %84 {offsets = [0, 0, 1], sizes = [4, 1, 14], strides = [1, 1, 1]} : vector<4x3x16xf32> to vector<4x1x14xf32>
    %88 = vector.shape_cast %87 : vector<4x1x14xf32> to vector<4x14xf32>
    %89 = vector.extract_strided_slice %84 {offsets = [0, 0, 2], sizes = [4, 1, 14], strides = [1, 1, 1]} : vector<4x3x16xf32> to vector<4x1x14xf32>
    %90 = vector.shape_cast %89 : vector<4x1x14xf32> to vector<4x14xf32>
    %91 = vector.extract_strided_slice %84 {offsets = [0, 1, 0], sizes = [4, 1, 14], strides = [1, 1, 1]} : vector<4x3x16xf32> to vector<4x1x14xf32>
    %92 = vector.shape_cast %91 : vector<4x1x14xf32> to vector<4x14xf32>
    %93 = vector.extract_strided_slice %84 {offsets = [0, 1, 1], sizes = [4, 1, 14], strides = [1, 1, 1]} : vector<4x3x16xf32> to vector<4x1x14xf32>
    %94 = vector.shape_cast %93 : vector<4x1x14xf32> to vector<4x14xf32>
    %95 = vector.extract_strided_slice %84 {offsets = [0, 1, 2], sizes = [4, 1, 14], strides = [1, 1, 1]} : vector<4x3x16xf32> to vector<4x1x14xf32>
    %96 = vector.shape_cast %95 : vector<4x1x14xf32> to vector<4x14xf32>
    %97 = vector.extract_strided_slice %84 {offsets = [0, 2, 0], sizes = [4, 1, 14], strides = [1, 1, 1]} : vector<4x3x16xf32> to vector<4x1x14xf32>
    %98 = vector.shape_cast %97 : vector<4x1x14xf32> to vector<4x14xf32>
    %99 = vector.extract_strided_slice %84 {offsets = [0, 2, 1], sizes = [4, 1, 14], strides = [1, 1, 1]} : vector<4x3x16xf32> to vector<4x1x14xf32>
    %100 = vector.shape_cast %99 : vector<4x1x14xf32> to vector<4x14xf32>
    %101 = vector.extract_strided_slice %84 {offsets = [0, 2, 2], sizes = [4, 1, 14], strides = [1, 1, 1]} : vector<4x3x16xf32> to vector<4x1x14xf32>
    %102 = vector.shape_cast %101 : vector<4x1x14xf32> to vector<4x14xf32>
    %103 = tpu.concatenate %86, %88, %90, %92, %94, %96, %98, %100, %102 in 0 : vector<4x14xf32>, vector<4x14xf32>, vector<4x14xf32>, vector<4x14xf32>, vector<4x14xf32>, vector<4x14xf32>, vector<4x14xf32>, vector<4x14xf32>, vector<4x14xf32> -> vector<36x14xf32>
    %104 = arith.truncf %103 : vector<36x14xf32> to vector<36x14xbf16>
    %cst_35 = arith.constant dense<0.000000e+00> : vector<8x14xf32>
    %105 = tpu.matmul %0, %104, %cst_35 {dimension_numbers = #tpu.dot_dimension_numbers<[1], [0], [0], [1], [0, 0, 1, 1], [], []>} : vector<8x36xbf16>, vector<36x14xbf16>, vector<8x14xf32> -> vector<8x14xf32>
    %106 = arith.addf %105, %4 : vector<8x14xf32>
    %cst_36 = arith.constant 5.000000e-01 : f32
    %107 = vector.broadcast %cst_36 : f32 to vector<8x14xf32>
    %108 = arith.mulf %107, %106 : vector<8x14xf32>
    %cst_37 = arith.constant 0.707106769 : f32
    %109 = vector.broadcast %cst_37 : f32 to vector<8x14xf32>
    %110 = arith.mulf %106, %109 : vector<8x14xf32>
    %111 = math.absf %110 : vector<8x14xf32>
    %cst_38 = arith.constant 0.327591091 : f32
    %112 = vector.broadcast %cst_38 : f32 to vector<8x14xf32>
    %113 = arith.mulf %112, %111 : vector<8x14xf32>
    %cst_39 = arith.constant 1.000000e+00 : f32
    %114 = vector.broadcast %cst_39 : f32 to vector<8x14xf32>
    %115 = arith.addf %114, %113 : vector<8x14xf32>
    %cst_40 = arith.constant 1.000000e+00 : f32
    %116 = vector.broadcast %cst_40 : f32 to vector<8x14xf32>
    %117 = arith.divf %116, %115 : vector<8x14xf32>
    %cst_41 = arith.constant 1.06140542 : f32
    %118 = vector.broadcast %cst_41 : f32 to vector<8x14xf32>
    %119 = arith.mulf %118, %117 : vector<8x14xf32>
    %cst_42 = arith.constant -1.45315206 : f32
    %120 = vector.broadcast %cst_42 : f32 to vector<8x14xf32>
    %121 = arith.addf %119, %120 : vector<8x14xf32>
    %122 = arith.mulf %121, %117 : vector<8x14xf32>
    %cst_43 = arith.constant 1.42141378 : f32
    %123 = vector.broadcast %cst_43 : f32 to vector<8x14xf32>
    %124 = arith.addf %122, %123 : vector<8x14xf32>
    %125 = arith.mulf %124, %117 : vector<8x14xf32>
    %cst_44 = arith.constant -0.284496725 : f32
    %126 = vector.broadcast %cst_44 : f32 to vector<8x14xf32>
    %127 = arith.addf %125, %126 : vector<8x14xf32>
    %128 = arith.mulf %127, %117 : vector<8x14xf32>
    %cst_45 = arith.constant 0.254829586 : f32
    %129 = vector.broadcast %cst_45 : f32 to vector<8x14xf32>
    %130 = arith.addf %128, %129 : vector<8x14xf32>
    %131 = arith.mulf %130, %117 : vector<8x14xf32>
    %cst_46 = arith.constant 0.000000e+00 : f32
    %132 = vector.broadcast %cst_46 : f32 to vector<8x14xf32>
    %133 = arith.subf %132, %111 : vector<8x14xf32>
    %134 = arith.mulf %133, %111 : vector<8x14xf32>
    %135 = math.exp %134 : vector<8x14xf32>
    %136 = arith.mulf %131, %135 : vector<8x14xf32>
    %cst_47 = arith.constant 1.000000e+00 : f32
    %137 = vector.broadcast %cst_47 : f32 to vector<8x14xf32>
    %138 = arith.subf %137, %136 : vector<8x14xf32>
    %cst_48 = arith.constant 0.000000e+00 : f32
    %139 = vector.broadcast %cst_48 : f32 to vector<8x14xf32>
    %140 = arith.cmpf oge, %110, %139 : vector<8x14xf32>
    %cst_49 = arith.constant 0.000000e+00 : f32
    %141 = vector.broadcast %cst_49 : f32 to vector<8x14xf32>
    %142 = arith.subf %141, %138 : vector<8x14xf32>
    %143 = arith.select %140, %138, %142 : vector<8x14xi1>, vector<8x14xf32>
    %cst_50 = arith.constant 1.000000e+00 : f32
    %144 = vector.broadcast %cst_50 : f32 to vector<8x14xf32>
    %145 = arith.addf %144, %143 : vector<8x14xf32>
    %146 = arith.mulf %108, %145 : vector<8x14xf32>
    %cst_51 = arith.constant dense<0.000000e+00> : vector<8x7xf32>
    %147 = tpu.matmul %146, %1, %cst_51 {dimension_numbers = #tpu.dot_dimension_numbers<[1], [0], [0], [1], [0, 0, 1, 1], [], []>} : vector<8x14xf32>, vector<14x7xf32>, vector<8x7xf32> -> vector<8x7xf32>
    %c0_52 = arith.constant 0 : index
    %c1 = arith.constant 1 : index
    %c0_53 = arith.constant 0 : index
    %c0_54 = arith.constant 0 : index
    %148 = vector.load %arg6[%c0_52, %c1, %c0_53, %c0_54] : memref<1x8x8x7xf32, #tpu.memory_space<vmem>>, vector<1x1x8x7xf32>
    %149 = vector.shape_cast %148 : vector<1x1x8x7xf32> to vector<8x7xf32>
    %150 = vector.shape_cast %147 : vector<8x7xf32> to vector<1x1x8x7xf32>
    tpu.vector_store %arg6[%c0_52, %c1, %c0_53, %c0_54], %150 {strides = array<i32>} : memref<1x8x8x7xf32, #tpu.memory_space<vmem>>, vector<1x1x8x7xf32>,
    %c8_i32_55 = arith.constant 8 : i32
    %151 = arith.muli %arg1, %c8_i32_55 : i32
    %c2_i32 = arith.constant 2 : i32
    %152 = arith.addi %151, %c2_i32 : i32
    %c13_i32_56 = arith.constant 13 : i32
    %153 = arith.minsi %152, %c13_i32_56 : i32
    %c1_i32_57 = arith.constant 1 : i32
    %154 = arith.muli %153, %c1_i32_57 : i32
    %c0_58 = arith.constant 0 : index
    %c0_59 = arith.constant 0 : index
    %155 = arith.index_cast %154 : i32 to index
    %c0_60 = arith.constant 0 : index
    %156 = vector.load %arg2[%c0_58, %c0_59, %155, %c0_60] : memref<1x4x16x16xf32, #tpu.memory_space<vmem>>, vector<1x4x3x16xf32>
    %157 = vector.shape_cast %156 : vector<1x4x3x16xf32> to vector<4x3x16xf32>
    %158 = vector.extract_strided_slice %157 {offsets = [0, 0, 0], sizes = [4, 1, 14], strides = [1, 1, 1]} : vector<4x3x16xf32> to vector<4x1x14xf32>
    %159 = vector.shape_cast %158 : vector<4x1x14xf32> to vector<4x14xf32>
    %160 = vector.extract_strided_slice %157 {offsets = [0, 0, 1], sizes = [4, 1, 14], strides = [1, 1, 1]} : vector<4x3x16xf32> to vector<4x1x14xf32>
    %161 = vector.shape_cast %160 : vector<4x1x14xf32> to vector<4x14xf32>
    %162 = vector.extract_strided_slice %157 {offsets = [0, 0, 2], sizes = [4, 1, 14], strides = [1, 1, 1]} : vector<4x3x16xf32> to vector<4x1x14xf32>
    %163 = vector.shape_cast %162 : vector<4x1x14xf32> to vector<4x14xf32>
    %164 = vector.extract_strided_slice %157 {offsets = [0, 1, 0], sizes = [4, 1, 14], strides = [1, 1, 1]} : vector<4x3x16xf32> to vector<4x1x14xf32>
    %165 = vector.shape_cast %164 : vector<4x1x14xf32> to vector<4x14xf32>
    %166 = vector.extract_strided_slice %157 {offsets = [0, 1, 1], sizes = [4, 1, 14], strides = [1, 1, 1]} : vector<4x3x16xf32> to vector<4x1x14xf32>
    %167 = vector.shape_cast %166 : vector<4x1x14xf32> to vector<4x14xf32>
    %168 = vector.extract_strided_slice %157 {offsets = [0, 1, 2], sizes = [4, 1, 14], strides = [1, 1, 1]} : vector<4x3x16xf32> to vector<4x1x14xf32>
    %169 = vector.shape_cast %168 : vector<4x1x14xf32> to vector<4x14xf32>
    %170 = vector.extract_strided_slice %157 {offsets = [0, 2, 0], sizes = [4, 1, 14], strides = [1, 1, 1]} : vector<4x3x16xf32> to vector<4x1x14xf32>
    %171 = vector.shape_cast %170 : vector<4x1x14xf32> to vector<4x14xf32>
    %172 = vector.extract_strided_slice %157 {offsets = [0, 2, 1], sizes = [4, 1, 14], strides = [1, 1, 1]} : vector<4x3x16xf32> to vector<4x1x14xf32>
    %173 = vector.shape_cast %172 : vector<4x1x14xf32> to vector<4x14xf32>
    %174 = vector.extract_strided_slice %157 {offsets = [0, 2, 2], sizes = [4, 1, 14], strides = [1, 1, 1]} : vector<4x3x16xf32> to vector<4x1x14xf32>
    %175 = vector.shape_cast %174 : vector<4x1x14xf32> to vector<4x14xf32>
    %176 = tpu.concatenate %159, %161, %163, %165, %167, %169, %171, %173, %175 in 0 : vector<4x14xf32>, vector<4x14xf32>, vector<4x14xf32>, vector<4x14xf32>, vector<4x14xf32>, vector<4x14xf32>, vector<4x14xf32>, vector<4x14xf32>, vector<4x14xf32> -> vector<36x14xf32>
    %177 = arith.truncf %176 : vector<36x14xf32> to vector<36x14xbf16>
    %cst_61 = arith.constant dense<0.000000e+00> : vector<8x14xf32>
    %178 = tpu.matmul %0, %177, %cst_61 {dimension_numbers = #tpu.dot_dimension_numbers<[1], [0], [0], [1], [0, 0, 1, 1], [], []>} : vector<8x36xbf16>, vector<36x14xbf16>, vector<8x14xf32> -> vector<8x14xf32>
    %179 = arith.addf %178, %4 : vector<8x14xf32>
    %cst_62 = arith.constant 5.000000e-01 : f32
    %180 = vector.broadcast %cst_62 : f32 to vector<8x14xf32>
    %181 = arith.mulf %180, %179 : vector<8x14xf32>
    %cst_63 = arith.constant 0.707106769 : f32
    %182 = vector.broadcast %cst_63 : f32 to vector<8x14xf32>
    %183 = arith.mulf %179, %182 : vector<8x14xf32>
    %184 = math.absf %183 : vector<8x14xf32>
    %cst_64 = arith.constant 0.327591091 : f32
    %185 = vector.broadcast %cst_64 : f32 to vector<8x14xf32>
    %186 = arith.mulf %185, %184 : vector<8x14xf32>
    %cst_65 = arith.constant 1.000000e+00 : f32
    %187 = vector.broadcast %cst_65 : f32 to vector<8x14xf32>
    %188 = arith.addf %187, %186 : vector<8x14xf32>
    %cst_66 = arith.constant 1.000000e+00 : f32
    %189 = vector.broadcast %cst_66 : f32 to vector<8x14xf32>
    %190 = arith.divf %189, %188 : vector<8x14xf32>
    %cst_67 = arith.constant 1.06140542 : f32
    %191 = vector.broadcast %cst_67 : f32 to vector<8x14xf32>
    %192 = arith.mulf %191, %190 : vector<8x14xf32>
    %cst_68 = arith.constant -1.45315206 : f32
    %193 = vector.broadcast %cst_68 : f32 to vector<8x14xf32>
    %194 = arith.addf %192, %193 : vector<8x14xf32>
    %195 = arith.mulf %194, %190 : vector<8x14xf32>
    %cst_69 = arith.constant 1.42141378 : f32
    %196 = vector.broadcast %cst_69 : f32 to vector<8x14xf32>
    %197 = arith.addf %195, %196 : vector<8x14xf32>
    %198 = arith.mulf %197, %190 : vector<8x14xf32>
    %cst_70 = arith.constant -0.284496725 : f32
    %199 = vector.broadcast %cst_70 : f32 to vector<8x14xf32>
    %200 = arith.addf %198, %199 : vector<8x14xf32>
    %201 = arith.mulf %200, %190 : vector<8x14xf32>
    %cst_71 = arith.constant 0.254829586 : f32
    %202 = vector.broadcast %cst_71 : f32 to vector<8x14xf32>
    %203 = arith.addf %201, %202 : vector<8x14xf32>
    %204 = arith.mulf %203, %190 : vector<8x14xf32>
    %cst_72 = arith.constant 0.000000e+00 : f32
    %205 = vector.broadcast %cst_72 : f32 to vector<8x14xf32>
    %206 = arith.subf %205, %184 : vector<8x14xf32>
    %207 = arith.mulf %206, %184 : vector<8x14xf32>
    %208 = math.exp %207 : vector<8x14xf32>
    %209 = arith.mulf %204, %208 : vector<8x14xf32>
    %cst_73 = arith.constant 1.000000e+00 : f32
    %210 = vector.broadcast %cst_73 : f32 to vector<8x14xf32>
    %211 = arith.subf %210, %209 : vector<8x14xf32>
    %cst_74 = arith.constant 0.000000e+00 : f32
    %212 = vector.broadcast %cst_74 : f32 to vector<8x14xf32>
    %213 = arith.cmpf oge, %183, %212 : vector<8x14xf32>
    %cst_75 = arith.constant 0.000000e+00 : f32
    %214 = vector.broadcast %cst_75 : f32 to vector<8x14xf32>
    %215 = arith.subf %214, %211 : vector<8x14xf32>
    %216 = arith.select %213, %211, %215 : vector<8x14xi1>, vector<8x14xf32>
    %cst_76 = arith.constant 1.000000e+00 : f32
    %217 = vector.broadcast %cst_76 : f32 to vector<8x14xf32>
    %218 = arith.addf %217, %216 : vector<8x14xf32>
    %219 = arith.mulf %181, %218 : vector<8x14xf32>
    %cst_77 = arith.constant dense<0.000000e+00> : vector<8x7xf32>
    %220 = tpu.matmul %219, %1, %cst_77 {dimension_numbers = #tpu.dot_dimension_numbers<[1], [0], [0], [1], [0, 0, 1, 1], [], []>} : vector<8x14xf32>, vector<14x7xf32>, vector<8x7xf32> -> vector<8x7xf32>
    %c0_78 = arith.constant 0 : index
    %c2 = arith.constant 2 : index
    %c0_79 = arith.constant 0 : index
    %c0_80 = arith.constant 0 : index
    %221 = vector.load %arg6[%c0_78, %c2, %c0_79, %c0_80] : memref<1x8x8x7xf32, #tpu.memory_space<vmem>>, vector<1x1x8x7xf32>
    %222 = vector.shape_cast %221 : vector<1x1x8x7xf32> to vector<8x7xf32>
    %223 = vector.shape_cast %220 : vector<8x7xf32> to vector<1x1x8x7xf32>
    tpu.vector_store %arg6[%c0_78, %c2, %c0_79, %c0_80], %223 {strides = array<i32>} : memref<1x8x8x7xf32, #tpu.memory_space<vmem>>, vector<1x1x8x7xf32>,
    %c8_i32_81 = arith.constant 8 : i32
    %224 = arith.muli %arg1, %c8_i32_81 : i32
    %c3_i32 = arith.constant 3 : i32
    %225 = arith.addi %224, %c3_i32 : i32
    %c13_i32_82 = arith.constant 13 : i32
    %226 = arith.minsi %225, %c13_i32_82 : i32
    %c1_i32_83 = arith.constant 1 : i32
    %227 = arith.muli %226, %c1_i32_83 : i32
    %c0_84 = arith.constant 0 : index
    %c0_85 = arith.constant 0 : index
    %228 = arith.index_cast %227 : i32 to index
    %c0_86 = arith.constant 0 : index
    %229 = vector.load %arg2[%c0_84, %c0_85, %228, %c0_86] : memref<1x4x16x16xf32, #tpu.memory_space<vmem>>, vector<1x4x3x16xf32>
    %230 = vector.shape_cast %229 : vector<1x4x3x16xf32> to vector<4x3x16xf32>
    %231 = vector.extract_strided_slice %230 {offsets = [0, 0, 0], sizes = [4, 1, 14], strides = [1, 1, 1]} : vector<4x3x16xf32> to vector<4x1x14xf32>
    %232 = vector.shape_cast %231 : vector<4x1x14xf32> to vector<4x14xf32>
    %233 = vector.extract_strided_slice %230 {offsets = [0, 0, 1], sizes = [4, 1, 14], strides = [1, 1, 1]} : vector<4x3x16xf32> to vector<4x1x14xf32>
    %234 = vector.shape_cast %233 : vector<4x1x14xf32> to vector<4x14xf32>
    %235 = vector.extract_strided_slice %230 {offsets = [0, 0, 2], sizes = [4, 1, 14], strides = [1, 1, 1]} : vector<4x3x16xf32> to vector<4x1x14xf32>
    %236 = vector.shape_cast %235 : vector<4x1x14xf32> to vector<4x14xf32>
    %237 = vector.extract_strided_slice %230 {offsets = [0, 1, 0], sizes = [4, 1, 14], strides = [1, 1, 1]} : vector<4x3x16xf32> to vector<4x1x14xf32>
    %238 = vector.shape_cast %237 : vector<4x1x14xf32> to vector<4x14xf32>
    %239 = vector.extract_strided_slice %230 {offsets = [0, 1, 1], sizes = [4, 1, 14], strides = [1, 1, 1]} : vector<4x3x16xf32> to vector<4x1x14xf32>
    %240 = vector.shape_cast %239 : vector<4x1x14xf32> to vector<4x14xf32>
    %241 = vector.extract_strided_slice %230 {offsets = [0, 1, 2], sizes = [4, 1, 14], strides = [1, 1, 1]} : vector<4x3x16xf32> to vector<4x1x14xf32>
    %242 = vector.shape_cast %241 : vector<4x1x14xf32> to vector<4x14xf32>
    %243 = vector.extract_strided_slice %230 {offsets = [0, 2, 0], sizes = [4, 1, 14], strides = [1, 1, 1]} : vector<4x3x16xf32> to vector<4x1x14xf32>
    %244 = vector.shape_cast %243 : vector<4x1x14xf32> to vector<4x14xf32>
    %245 = vector.extract_strided_slice %230 {offsets = [0, 2, 1], sizes = [4, 1, 14], strides = [1, 1, 1]} : vector<4x3x16xf32> to vector<4x1x14xf32>
    %246 = vector.shape_cast %245 : vector<4x1x14xf32> to vector<4x14xf32>
    %247 = vector.extract_strided_slice %230 {offsets = [0, 2, 2], sizes = [4, 1, 14], strides = [1, 1, 1]} : vector<4x3x16xf32> to vector<4x1x14xf32>
    %248 = vector.shape_cast %247 : vector<4x1x14xf32> to vector<4x14xf32>
    %249 = tpu.concatenate %232, %234, %236, %238, %240, %242, %244, %246, %248 in 0 : vector<4x14xf32>, vector<4x14xf32>, vector<4x14xf32>, vector<4x14xf32>, vector<4x14xf32>, vector<4x14xf32>, vector<4x14xf32>, vector<4x14xf32>, vector<4x14xf32> -> vector<36x14xf32>
    %250 = arith.truncf %249 : vector<36x14xf32> to vector<36x14xbf16>
    %cst_87 = arith.constant dense<0.000000e+00> : vector<8x14xf32>
    %251 = tpu.matmul %0, %250, %cst_87 {dimension_numbers = #tpu.dot_dimension_numbers<[1], [0], [0], [1], [0, 0, 1, 1], [], []>} : vector<8x36xbf16>, vector<36x14xbf16>, vector<8x14xf32> -> vector<8x14xf32>
    %252 = arith.addf %251, %4 : vector<8x14xf32>
    %cst_88 = arith.constant 5.000000e-01 : f32
    %253 = vector.broadcast %cst_88 : f32 to vector<8x14xf32>
    %254 = arith.mulf %253, %252 : vector<8x14xf32>
    %cst_89 = arith.constant 0.707106769 : f32
    %255 = vector.broadcast %cst_89 : f32 to vector<8x14xf32>
    %256 = arith.mulf %252, %255 : vector<8x14xf32>
    %257 = math.absf %256 : vector<8x14xf32>
    %cst_90 = arith.constant 0.327591091 : f32
    %258 = vector.broadcast %cst_90 : f32 to vector<8x14xf32>
    %259 = arith.mulf %258, %257 : vector<8x14xf32>
    %cst_91 = arith.constant 1.000000e+00 : f32
    %260 = vector.broadcast %cst_91 : f32 to vector<8x14xf32>
    %261 = arith.addf %260, %259 : vector<8x14xf32>
    %cst_92 = arith.constant 1.000000e+00 : f32
    %262 = vector.broadcast %cst_92 : f32 to vector<8x14xf32>
    %263 = arith.divf %262, %261 : vector<8x14xf32>
    %cst_93 = arith.constant 1.06140542 : f32
    %264 = vector.broadcast %cst_93 : f32 to vector<8x14xf32>
    %265 = arith.mulf %264, %263 : vector<8x14xf32>
    %cst_94 = arith.constant -1.45315206 : f32
    %266 = vector.broadcast %cst_94 : f32 to vector<8x14xf32>
    %267 = arith.addf %265, %266 : vector<8x14xf32>
    %268 = arith.mulf %267, %263 : vector<8x14xf32>
    %cst_95 = arith.constant 1.42141378 : f32
    %269 = vector.broadcast %cst_95 : f32 to vector<8x14xf32>
    %270 = arith.addf %268, %269 : vector<8x14xf32>
    %271 = arith.mulf %270, %263 : vector<8x14xf32>
    %cst_96 = arith.constant -0.284496725 : f32
    %272 = vector.broadcast %cst_96 : f32 to vector<8x14xf32>
    %273 = arith.addf %271, %272 : vector<8x14xf32>
    %274 = arith.mulf %273, %263 : vector<8x14xf32>
    %cst_97 = arith.constant 0.254829586 : f32
    %275 = vector.broadcast %cst_97 : f32 to vector<8x14xf32>
    %276 = arith.addf %274, %275 : vector<8x14xf32>
    %277 = arith.mulf %276, %263 : vector<8x14xf32>
    %cst_98 = arith.constant 0.000000e+00 : f32
    %278 = vector.broadcast %cst_98 : f32 to vector<8x14xf32>
    %279 = arith.subf %278, %257 : vector<8x14xf32>
    %280 = arith.mulf %279, %257 : vector<8x14xf32>
    %281 = math.exp %280 : vector<8x14xf32>
    %282 = arith.mulf %277, %281 : vector<8x14xf32>
    %cst_99 = arith.constant 1.000000e+00 : f32
    %283 = vector.broadcast %cst_99 : f32 to vector<8x14xf32>
    %284 = arith.subf %283, %282 : vector<8x14xf32>
    %cst_100 = arith.constant 0.000000e+00 : f32
    %285 = vector.broadcast %cst_100 : f32 to vector<8x14xf32>
    %286 = arith.cmpf oge, %256, %285 : vector<8x14xf32>
    %cst_101 = arith.constant 0.000000e+00 : f32
    %287 = vector.broadcast %cst_101 : f32 to vector<8x14xf32>
    %288 = arith.subf %287, %284 : vector<8x14xf32>
    %289 = arith.select %286, %284, %288 : vector<8x14xi1>, vector<8x14xf32>
    %cst_102 = arith.constant 1.000000e+00 : f32
    %290 = vector.broadcast %cst_102 : f32 to vector<8x14xf32>
    %291 = arith.addf %290, %289 : vector<8x14xf32>
    %292 = arith.mulf %254, %291 : vector<8x14xf32>
    %cst_103 = arith.constant dense<0.000000e+00> : vector<8x7xf32>
    %293 = tpu.matmul %292, %1, %cst_103 {dimension_numbers = #tpu.dot_dimension_numbers<[1], [0], [0], [1], [0, 0, 1, 1], [], []>} : vector<8x14xf32>, vector<14x7xf32>, vector<8x7xf32> -> vector<8x7xf32>
    %c0_104 = arith.constant 0 : index
    %c3 = arith.constant 3 : index
    %c0_105 = arith.constant 0 : index
    %c0_106 = arith.constant 0 : index
    %294 = vector.load %arg6[%c0_104, %c3, %c0_105, %c0_106] : memref<1x8x8x7xf32, #tpu.memory_space<vmem>>, vector<1x1x8x7xf32>
    %295 = vector.shape_cast %294 : vector<1x1x8x7xf32> to vector<8x7xf32>
    %296 = vector.shape_cast %293 : vector<8x7xf32> to vector<1x1x8x7xf32>
    tpu.vector_store %arg6[%c0_104, %c3, %c0_105, %c0_106], %296 {strides = array<i32>} : memref<1x8x8x7xf32, #tpu.memory_space<vmem>>, vector<1x1x8x7xf32>,
    %c8_i32_107 = arith.constant 8 : i32
    %297 = arith.muli %arg1, %c8_i32_107 : i32
    %c4_i32 = arith.constant 4 : i32
    %298 = arith.addi %297, %c4_i32 : i32
    %c13_i32_108 = arith.constant 13 : i32
    %299 = arith.minsi %298, %c13_i32_108 : i32
    %c1_i32_109 = arith.constant 1 : i32
    %300 = arith.muli %299, %c1_i32_109 : i32
    %c0_110 = arith.constant 0 : index
    %c0_111 = arith.constant 0 : index
    %301 = arith.index_cast %300 : i32 to index
    %c0_112 = arith.constant 0 : index
    %302 = vector.load %arg2[%c0_110, %c0_111, %301, %c0_112] : memref<1x4x16x16xf32, #tpu.memory_space<vmem>>, vector<1x4x3x16xf32>
    %303 = vector.shape_cast %302 : vector<1x4x3x16xf32> to vector<4x3x16xf32>
    %304 = vector.extract_strided_slice %303 {offsets = [0, 0, 0], sizes = [4, 1, 14], strides = [1, 1, 1]} : vector<4x3x16xf32> to vector<4x1x14xf32>
    %305 = vector.shape_cast %304 : vector<4x1x14xf32> to vector<4x14xf32>
    %306 = vector.extract_strided_slice %303 {offsets = [0, 0, 1], sizes = [4, 1, 14], strides = [1, 1, 1]} : vector<4x3x16xf32> to vector<4x1x14xf32>
    %307 = vector.shape_cast %306 : vector<4x1x14xf32> to vector<4x14xf32>
    %308 = vector.extract_strided_slice %303 {offsets = [0, 0, 2], sizes = [4, 1, 14], strides = [1, 1, 1]} : vector<4x3x16xf32> to vector<4x1x14xf32>
    %309 = vector.shape_cast %308 : vector<4x1x14xf32> to vector<4x14xf32>
    %310 = vector.extract_strided_slice %303 {offsets = [0, 1, 0], sizes = [4, 1, 14], strides = [1, 1, 1]} : vector<4x3x16xf32> to vector<4x1x14xf32>
    %311 = vector.shape_cast %310 : vector<4x1x14xf32> to vector<4x14xf32>
    %312 = vector.extract_strided_slice %303 {offsets = [0, 1, 1], sizes = [4, 1, 14], strides = [1, 1, 1]} : vector<4x3x16xf32> to vector<4x1x14xf32>
    %313 = vector.shape_cast %312 : vector<4x1x14xf32> to vector<4x14xf32>
    %314 = vector.extract_strided_slice %303 {offsets = [0, 1, 2], sizes = [4, 1, 14], strides = [1, 1, 1]} : vector<4x3x16xf32> to vector<4x1x14xf32>
    %315 = vector.shape_cast %314 : vector<4x1x14xf32> to vector<4x14xf32>
    %316 = vector.extract_strided_slice %303 {offsets = [0, 2, 0], sizes = [4, 1, 14], strides = [1, 1, 1]} : vector<4x3x16xf32> to vector<4x1x14xf32>
    %317 = vector.shape_cast %316 : vector<4x1x14xf32> to vector<4x14xf32>
    %318 = vector.extract_strided_slice %303 {offsets = [0, 2, 1], sizes = [4, 1, 14], strides = [1, 1, 1]} : vector<4x3x16xf32> to vector<4x1x14xf32>
    %319 = vector.shape_cast %318 : vector<4x1x14xf32> to vector<4x14xf32>
    %320 = vector.extract_strided_slice %303 {offsets = [0, 2, 2], sizes = [4, 1, 14], strides = [1, 1, 1]} : vector<4x3x16xf32> to vector<4x1x14xf32>
    %321 = vector.shape_cast %320 : vector<4x1x14xf32> to vector<4x14xf32>
    %322 = tpu.concatenate %305, %307, %309, %311, %313, %315, %317, %319, %321 in 0 : vector<4x14xf32>, vector<4x14xf32>, vector<4x14xf32>, vector<4x14xf32>, vector<4x14xf32>, vector<4x14xf32>, vector<4x14xf32>, vector<4x14xf32>, vector<4x14xf32> -> vector<36x14xf32>
    %323 = arith.truncf %322 : vector<36x14xf32> to vector<36x14xbf16>
    %cst_113 = arith.constant dense<0.000000e+00> : vector<8x14xf32>
    %324 = tpu.matmul %0, %323, %cst_113 {dimension_numbers = #tpu.dot_dimension_numbers<[1], [0], [0], [1], [0, 0, 1, 1], [], []>} : vector<8x36xbf16>, vector<36x14xbf16>, vector<8x14xf32> -> vector<8x14xf32>
    %325 = arith.addf %324, %4 : vector<8x14xf32>
    %cst_114 = arith.constant 5.000000e-01 : f32
    %326 = vector.broadcast %cst_114 : f32 to vector<8x14xf32>
    %327 = arith.mulf %326, %325 : vector<8x14xf32>
    %cst_115 = arith.constant 0.707106769 : f32
    %328 = vector.broadcast %cst_115 : f32 to vector<8x14xf32>
    %329 = arith.mulf %325, %328 : vector<8x14xf32>
    %330 = math.absf %329 : vector<8x14xf32>
    %cst_116 = arith.constant 0.327591091 : f32
    %331 = vector.broadcast %cst_116 : f32 to vector<8x14xf32>
    %332 = arith.mulf %331, %330 : vector<8x14xf32>
    %cst_117 = arith.constant 1.000000e+00 : f32
    %333 = vector.broadcast %cst_117 : f32 to vector<8x14xf32>
    %334 = arith.addf %333, %332 : vector<8x14xf32>
    %cst_118 = arith.constant 1.000000e+00 : f32
    %335 = vector.broadcast %cst_118 : f32 to vector<8x14xf32>
    %336 = arith.divf %335, %334 : vector<8x14xf32>
    %cst_119 = arith.constant 1.06140542 : f32
    %337 = vector.broadcast %cst_119 : f32 to vector<8x14xf32>
    %338 = arith.mulf %337, %336 : vector<8x14xf32>
    %cst_120 = arith.constant -1.45315206 : f32
    %339 = vector.broadcast %cst_120 : f32 to vector<8x14xf32>
    %340 = arith.addf %338, %339 : vector<8x14xf32>
    %341 = arith.mulf %340, %336 : vector<8x14xf32>
    %cst_121 = arith.constant 1.42141378 : f32
    %342 = vector.broadcast %cst_121 : f32 to vector<8x14xf32>
    %343 = arith.addf %341, %342 : vector<8x14xf32>
    %344 = arith.mulf %343, %336 : vector<8x14xf32>
    %cst_122 = arith.constant -0.284496725 : f32
    %345 = vector.broadcast %cst_122 : f32 to vector<8x14xf32>
    %346 = arith.addf %344, %345 : vector<8x14xf32>
    %347 = arith.mulf %346, %336 : vector<8x14xf32>
    %cst_123 = arith.constant 0.254829586 : f32
    %348 = vector.broadcast %cst_123 : f32 to vector<8x14xf32>
    %349 = arith.addf %347, %348 : vector<8x14xf32>
    %350 = arith.mulf %349, %336 : vector<8x14xf32>
    %cst_124 = arith.constant 0.000000e+00 : f32
    %351 = vector.broadcast %cst_124 : f32 to vector<8x14xf32>
    %352 = arith.subf %351, %330 : vector<8x14xf32>
    %353 = arith.mulf %352, %330 : vector<8x14xf32>
    %354 = math.exp %353 : vector<8x14xf32>
    %355 = arith.mulf %350, %354 : vector<8x14xf32>
    %cst_125 = arith.constant 1.000000e+00 : f32
    %356 = vector.broadcast %cst_125 : f32 to vector<8x14xf32>
    %357 = arith.subf %356, %355 : vector<8x14xf32>
    %cst_126 = arith.constant 0.000000e+00 : f32
    %358 = vector.broadcast %cst_126 : f32 to vector<8x14xf32>
    %359 = arith.cmpf oge, %329, %358 : vector<8x14xf32>
    %cst_127 = arith.constant 0.000000e+00 : f32
    %360 = vector.broadcast %cst_127 : f32 to vector<8x14xf32>
    %361 = arith.subf %360, %357 : vector<8x14xf32>
    %362 = arith.select %359, %357, %361 : vector<8x14xi1>, vector<8x14xf32>
    %cst_128 = arith.constant 1.000000e+00 : f32
    %363 = vector.broadcast %cst_128 : f32 to vector<8x14xf32>
    %364 = arith.addf %363, %362 : vector<8x14xf32>
    %365 = arith.mulf %327, %364 : vector<8x14xf32>
    %cst_129 = arith.constant dense<0.000000e+00> : vector<8x7xf32>
    %366 = tpu.matmul %365, %1, %cst_129 {dimension_numbers = #tpu.dot_dimension_numbers<[1], [0], [0], [1], [0, 0, 1, 1], [], []>} : vector<8x14xf32>, vector<14x7xf32>, vector<8x7xf32> -> vector<8x7xf32>
    %c0_130 = arith.constant 0 : index
    %c4 = arith.constant 4 : index
    %c0_131 = arith.constant 0 : index
    %c0_132 = arith.constant 0 : index
    %367 = vector.load %arg6[%c0_130, %c4, %c0_131, %c0_132] : memref<1x8x8x7xf32, #tpu.memory_space<vmem>>, vector<1x1x8x7xf32>
    %368 = vector.shape_cast %367 : vector<1x1x8x7xf32> to vector<8x7xf32>
    %369 = vector.shape_cast %366 : vector<8x7xf32> to vector<1x1x8x7xf32>
    tpu.vector_store %arg6[%c0_130, %c4, %c0_131, %c0_132], %369 {strides = array<i32>} : memref<1x8x8x7xf32, #tpu.memory_space<vmem>>, vector<1x1x8x7xf32>,
    %c8_i32_133 = arith.constant 8 : i32
    %370 = arith.muli %arg1, %c8_i32_133 : i32
    %c5_i32 = arith.constant 5 : i32
    %371 = arith.addi %370, %c5_i32 : i32
    %c13_i32_134 = arith.constant 13 : i32
    %372 = arith.minsi %371, %c13_i32_134 : i32
    %c1_i32_135 = arith.constant 1 : i32
    %373 = arith.muli %372, %c1_i32_135 : i32
    %c0_136 = arith.constant 0 : index
    %c0_137 = arith.constant 0 : index
    %374 = arith.index_cast %373 : i32 to index
    %c0_138 = arith.constant 0 : index
    %375 = vector.load %arg2[%c0_136, %c0_137, %374, %c0_138] : memref<1x4x16x16xf32, #tpu.memory_space<vmem>>, vector<1x4x3x16xf32>
    %376 = vector.shape_cast %375 : vector<1x4x3x16xf32> to vector<4x3x16xf32>
    %377 = vector.extract_strided_slice %376 {offsets = [0, 0, 0], sizes = [4, 1, 14], strides = [1, 1, 1]} : vector<4x3x16xf32> to vector<4x1x14xf32>
    %378 = vector.shape_cast %377 : vector<4x1x14xf32> to vector<4x14xf32>
    %379 = vector.extract_strided_slice %376 {offsets = [0, 0, 1], sizes = [4, 1, 14], strides = [1, 1, 1]} : vector<4x3x16xf32> to vector<4x1x14xf32>
    %380 = vector.shape_cast %379 : vector<4x1x14xf32> to vector<4x14xf32>
    %381 = vector.extract_strided_slice %376 {offsets = [0, 0, 2], sizes = [4, 1, 14], strides = [1, 1, 1]} : vector<4x3x16xf32> to vector<4x1x14xf32>
    %382 = vector.shape_cast %381 : vector<4x1x14xf32> to vector<4x14xf32>
    %383 = vector.extract_strided_slice %376 {offsets = [0, 1, 0], sizes = [4, 1, 14], strides = [1, 1, 1]} : vector<4x3x16xf32> to vector<4x1x14xf32>
    %384 = vector.shape_cast %383 : vector<4x1x14xf32> to vector<4x14xf32>
    %385 = vector.extract_strided_slice %376 {offsets = [0, 1, 1], sizes = [4, 1, 14], strides = [1, 1, 1]} : vector<4x3x16xf32> to vector<4x1x14xf32>
    %386 = vector.shape_cast %385 : vector<4x1x14xf32> to vector<4x14xf32>
    %387 = vector.extract_strided_slice %376 {offsets = [0, 1, 2], sizes = [4, 1, 14], strides = [1, 1, 1]} : vector<4x3x16xf32> to vector<4x1x14xf32>
    %388 = vector.shape_cast %387 : vector<4x1x14xf32> to vector<4x14xf32>
    %389 = vector.extract_strided_slice %376 {offsets = [0, 2, 0], sizes = [4, 1, 14], strides = [1, 1, 1]} : vector<4x3x16xf32> to vector<4x1x14xf32>
    %390 = vector.shape_cast %389 : vector<4x1x14xf32> to vector<4x14xf32>
    %391 = vector.extract_strided_slice %376 {offsets = [0, 2, 1], sizes = [4, 1, 14], strides = [1, 1, 1]} : vector<4x3x16xf32> to vector<4x1x14xf32>
    %392 = vector.shape_cast %391 : vector<4x1x14xf32> to vector<4x14xf32>
    %393 = vector.extract_strided_slice %376 {offsets = [0, 2, 2], sizes = [4, 1, 14], strides = [1, 1, 1]} : vector<4x3x16xf32> to vector<4x1x14xf32>
    %394 = vector.shape_cast %393 : vector<4x1x14xf32> to vector<4x14xf32>
    %395 = tpu.concatenate %378, %380, %382, %384, %386, %388, %390, %392, %394 in 0 : vector<4x14xf32>, vector<4x14xf32>, vector<4x14xf32>, vector<4x14xf32>, vector<4x14xf32>, vector<4x14xf32>, vector<4x14xf32>, vector<4x14xf32>, vector<4x14xf32> -> vector<36x14xf32>
    %396 = arith.truncf %395 : vector<36x14xf32> to vector<36x14xbf16>
    %cst_139 = arith.constant dense<0.000000e+00> : vector<8x14xf32>
    %397 = tpu.matmul %0, %396, %cst_139 {dimension_numbers = #tpu.dot_dimension_numbers<[1], [0], [0], [1], [0, 0, 1, 1], [], []>} : vector<8x36xbf16>, vector<36x14xbf16>, vector<8x14xf32> -> vector<8x14xf32>
    %398 = arith.addf %397, %4 : vector<8x14xf32>
    %cst_140 = arith.constant 5.000000e-01 : f32
    %399 = vector.broadcast %cst_140 : f32 to vector<8x14xf32>
    %400 = arith.mulf %399, %398 : vector<8x14xf32>
    %cst_141 = arith.constant 0.707106769 : f32
    %401 = vector.broadcast %cst_141 : f32 to vector<8x14xf32>
    %402 = arith.mulf %398, %401 : vector<8x14xf32>
    %403 = math.absf %402 : vector<8x14xf32>
    %cst_142 = arith.constant 0.327591091 : f32
    %404 = vector.broadcast %cst_142 : f32 to vector<8x14xf32>
    %405 = arith.mulf %404, %403 : vector<8x14xf32>
    %cst_143 = arith.constant 1.000000e+00 : f32
    %406 = vector.broadcast %cst_143 : f32 to vector<8x14xf32>
    %407 = arith.addf %406, %405 : vector<8x14xf32>
    %cst_144 = arith.constant 1.000000e+00 : f32
    %408 = vector.broadcast %cst_144 : f32 to vector<8x14xf32>
    %409 = arith.divf %408, %407 : vector<8x14xf32>
    %cst_145 = arith.constant 1.06140542 : f32
    %410 = vector.broadcast %cst_145 : f32 to vector<8x14xf32>
    %411 = arith.mulf %410, %409 : vector<8x14xf32>
    %cst_146 = arith.constant -1.45315206 : f32
    %412 = vector.broadcast %cst_146 : f32 to vector<8x14xf32>
    %413 = arith.addf %411, %412 : vector<8x14xf32>
    %414 = arith.mulf %413, %409 : vector<8x14xf32>
    %cst_147 = arith.constant 1.42141378 : f32
    %415 = vector.broadcast %cst_147 : f32 to vector<8x14xf32>
    %416 = arith.addf %414, %415 : vector<8x14xf32>
    %417 = arith.mulf %416, %409 : vector<8x14xf32>
    %cst_148 = arith.constant -0.284496725 : f32
    %418 = vector.broadcast %cst_148 : f32 to vector<8x14xf32>
    %419 = arith.addf %417, %418 : vector<8x14xf32>
    %420 = arith.mulf %419, %409 : vector<8x14xf32>
    %cst_149 = arith.constant 0.254829586 : f32
    %421 = vector.broadcast %cst_149 : f32 to vector<8x14xf32>
    %422 = arith.addf %420, %421 : vector<8x14xf32>
    %423 = arith.mulf %422, %409 : vector<8x14xf32>
    %cst_150 = arith.constant 0.000000e+00 : f32
    %424 = vector.broadcast %cst_150 : f32 to vector<8x14xf32>
    %425 = arith.subf %424, %403 : vector<8x14xf32>
    %426 = arith.mulf %425, %403 : vector<8x14xf32>
    %427 = math.exp %426 : vector<8x14xf32>
    %428 = arith.mulf %423, %427 : vector<8x14xf32>
    %cst_151 = arith.constant 1.000000e+00 : f32
    %429 = vector.broadcast %cst_151 : f32 to vector<8x14xf32>
    %430 = arith.subf %429, %428 : vector<8x14xf32>
    %cst_152 = arith.constant 0.000000e+00 : f32
    %431 = vector.broadcast %cst_152 : f32 to vector<8x14xf32>
    %432 = arith.cmpf oge, %402, %431 : vector<8x14xf32>
    %cst_153 = arith.constant 0.000000e+00 : f32
    %433 = vector.broadcast %cst_153 : f32 to vector<8x14xf32>
    %434 = arith.subf %433, %430 : vector<8x14xf32>
    %435 = arith.select %432, %430, %434 : vector<8x14xi1>, vector<8x14xf32>
    %cst_154 = arith.constant 1.000000e+00 : f32
    %436 = vector.broadcast %cst_154 : f32 to vector<8x14xf32>
    %437 = arith.addf %436, %435 : vector<8x14xf32>
    %438 = arith.mulf %400, %437 : vector<8x14xf32>
    %cst_155 = arith.constant dense<0.000000e+00> : vector<8x7xf32>
    %439 = tpu.matmul %438, %1, %cst_155 {dimension_numbers = #tpu.dot_dimension_numbers<[1], [0], [0], [1], [0, 0, 1, 1], [], []>} : vector<8x14xf32>, vector<14x7xf32>, vector<8x7xf32> -> vector<8x7xf32>
    %c0_156 = arith.constant 0 : index
    %c5 = arith.constant 5 : index
    %c0_157 = arith.constant 0 : index
    %c0_158 = arith.constant 0 : index
    %440 = vector.load %arg6[%c0_156, %c5, %c0_157, %c0_158] : memref<1x8x8x7xf32, #tpu.memory_space<vmem>>, vector<1x1x8x7xf32>
    %441 = vector.shape_cast %440 : vector<1x1x8x7xf32> to vector<8x7xf32>
    %442 = vector.shape_cast %439 : vector<8x7xf32> to vector<1x1x8x7xf32>
    tpu.vector_store %arg6[%c0_156, %c5, %c0_157, %c0_158], %442 {strides = array<i32>} : memref<1x8x8x7xf32, #tpu.memory_space<vmem>>, vector<1x1x8x7xf32>,
    %c8_i32_159 = arith.constant 8 : i32
    %443 = arith.muli %arg1, %c8_i32_159 : i32
    %c6_i32 = arith.constant 6 : i32
    %444 = arith.addi %443, %c6_i32 : i32
    %c13_i32_160 = arith.constant 13 : i32
    %445 = arith.minsi %444, %c13_i32_160 : i32
    %c1_i32_161 = arith.constant 1 : i32
    %446 = arith.muli %445, %c1_i32_161 : i32
    %c0_162 = arith.constant 0 : index
    %c0_163 = arith.constant 0 : index
    %447 = arith.index_cast %446 : i32 to index
    %c0_164 = arith.constant 0 : index
    %448 = vector.load %arg2[%c0_162, %c0_163, %447, %c0_164] : memref<1x4x16x16xf32, #tpu.memory_space<vmem>>, vector<1x4x3x16xf32>
    %449 = vector.shape_cast %448 : vector<1x4x3x16xf32> to vector<4x3x16xf32>
    %450 = vector.extract_strided_slice %449 {offsets = [0, 0, 0], sizes = [4, 1, 14], strides = [1, 1, 1]} : vector<4x3x16xf32> to vector<4x1x14xf32>
    %451 = vector.shape_cast %450 : vector<4x1x14xf32> to vector<4x14xf32>
    %452 = vector.extract_strided_slice %449 {offsets = [0, 0, 1], sizes = [4, 1, 14], strides = [1, 1, 1]} : vector<4x3x16xf32> to vector<4x1x14xf32>
    %453 = vector.shape_cast %452 : vector<4x1x14xf32> to vector<4x14xf32>
    %454 = vector.extract_strided_slice %449 {offsets = [0, 0, 2], sizes = [4, 1, 14], strides = [1, 1, 1]} : vector<4x3x16xf32> to vector<4x1x14xf32>
    %455 = vector.shape_cast %454 : vector<4x1x14xf32> to vector<4x14xf32>
    %456 = vector.extract_strided_slice %449 {offsets = [0, 1, 0], sizes = [4, 1, 14], strides = [1, 1, 1]} : vector<4x3x16xf32> to vector<4x1x14xf32>
    %457 = vector.shape_cast %456 : vector<4x1x14xf32> to vector<4x14xf32>
    %458 = vector.extract_strided_slice %449 {offsets = [0, 1, 1], sizes = [4, 1, 14], strides = [1, 1, 1]} : vector<4x3x16xf32> to vector<4x1x14xf32>
    %459 = vector.shape_cast %458 : vector<4x1x14xf32> to vector<4x14xf32>
    %460 = vector.extract_strided_slice %449 {offsets = [0, 1, 2], sizes = [4, 1, 14], strides = [1, 1, 1]} : vector<4x3x16xf32> to vector<4x1x14xf32>
    %461 = vector.shape_cast %460 : vector<4x1x14xf32> to vector<4x14xf32>
    %462 = vector.extract_strided_slice %449 {offsets = [0, 2, 0], sizes = [4, 1, 14], strides = [1, 1, 1]} : vector<4x3x16xf32> to vector<4x1x14xf32>
    %463 = vector.shape_cast %462 : vector<4x1x14xf32> to vector<4x14xf32>
    %464 = vector.extract_strided_slice %449 {offsets = [0, 2, 1], sizes = [4, 1, 14], strides = [1, 1, 1]} : vector<4x3x16xf32> to vector<4x1x14xf32>
    %465 = vector.shape_cast %464 : vector<4x1x14xf32> to vector<4x14xf32>
    %466 = vector.extract_strided_slice %449 {offsets = [0, 2, 2], sizes = [4, 1, 14], strides = [1, 1, 1]} : vector<4x3x16xf32> to vector<4x1x14xf32>
    %467 = vector.shape_cast %466 : vector<4x1x14xf32> to vector<4x14xf32>
    %468 = tpu.concatenate %451, %453, %455, %457, %459, %461, %463, %465, %467 in 0 : vector<4x14xf32>, vector<4x14xf32>, vector<4x14xf32>, vector<4x14xf32>, vector<4x14xf32>, vector<4x14xf32>, vector<4x14xf32>, vector<4x14xf32>, vector<4x14xf32> -> vector<36x14xf32>
    %469 = arith.truncf %468 : vector<36x14xf32> to vector<36x14xbf16>
    %cst_165 = arith.constant dense<0.000000e+00> : vector<8x14xf32>
    %470 = tpu.matmul %0, %469, %cst_165 {dimension_numbers = #tpu.dot_dimension_numbers<[1], [0], [0], [1], [0, 0, 1, 1], [], []>} : vector<8x36xbf16>, vector<36x14xbf16>, vector<8x14xf32> -> vector<8x14xf32>
    %471 = arith.addf %470, %4 : vector<8x14xf32>
    %cst_166 = arith.constant 5.000000e-01 : f32
    %472 = vector.broadcast %cst_166 : f32 to vector<8x14xf32>
    %473 = arith.mulf %472, %471 : vector<8x14xf32>
    %cst_167 = arith.constant 0.707106769 : f32
    %474 = vector.broadcast %cst_167 : f32 to vector<8x14xf32>
    %475 = arith.mulf %471, %474 : vector<8x14xf32>
    %476 = math.absf %475 : vector<8x14xf32>
    %cst_168 = arith.constant 0.327591091 : f32
    %477 = vector.broadcast %cst_168 : f32 to vector<8x14xf32>
    %478 = arith.mulf %477, %476 : vector<8x14xf32>
    %cst_169 = arith.constant 1.000000e+00 : f32
    %479 = vector.broadcast %cst_169 : f32 to vector<8x14xf32>
    %480 = arith.addf %479, %478 : vector<8x14xf32>
    %cst_170 = arith.constant 1.000000e+00 : f32
    %481 = vector.broadcast %cst_170 : f32 to vector<8x14xf32>
    %482 = arith.divf %481, %480 : vector<8x14xf32>
    %cst_171 = arith.constant 1.06140542 : f32
    %483 = vector.broadcast %cst_171 : f32 to vector<8x14xf32>
    %484 = arith.mulf %483, %482 : vector<8x14xf32>
    %cst_172 = arith.constant -1.45315206 : f32
    %485 = vector.broadcast %cst_172 : f32 to vector<8x14xf32>
    %486 = arith.addf %484, %485 : vector<8x14xf32>
    %487 = arith.mulf %486, %482 : vector<8x14xf32>
    %cst_173 = arith.constant 1.42141378 : f32
    %488 = vector.broadcast %cst_173 : f32 to vector<8x14xf32>
    %489 = arith.addf %487, %488 : vector<8x14xf32>
    %490 = arith.mulf %489, %482 : vector<8x14xf32>
    %cst_174 = arith.constant -0.284496725 : f32
    %491 = vector.broadcast %cst_174 : f32 to vector<8x14xf32>
    %492 = arith.addf %490, %491 : vector<8x14xf32>
    %493 = arith.mulf %492, %482 : vector<8x14xf32>
    %cst_175 = arith.constant 0.254829586 : f32
    %494 = vector.broadcast %cst_175 : f32 to vector<8x14xf32>
    %495 = arith.addf %493, %494 : vector<8x14xf32>
    %496 = arith.mulf %495, %482 : vector<8x14xf32>
    %cst_176 = arith.constant 0.000000e+00 : f32
    %497 = vector.broadcast %cst_176 : f32 to vector<8x14xf32>
    %498 = arith.subf %497, %476 : vector<8x14xf32>
    %499 = arith.mulf %498, %476 : vector<8x14xf32>
    %500 = math.exp %499 : vector<8x14xf32>
    %501 = arith.mulf %496, %500 : vector<8x14xf32>
    %cst_177 = arith.constant 1.000000e+00 : f32
    %502 = vector.broadcast %cst_177 : f32 to vector<8x14xf32>
    %503 = arith.subf %502, %501 : vector<8x14xf32>
    %cst_178 = arith.constant 0.000000e+00 : f32
    %504 = vector.broadcast %cst_178 : f32 to vector<8x14xf32>
    %505 = arith.cmpf oge, %475, %504 : vector<8x14xf32>
    %cst_179 = arith.constant 0.000000e+00 : f32
    %506 = vector.broadcast %cst_179 : f32 to vector<8x14xf32>
    %507 = arith.subf %506, %503 : vector<8x14xf32>
    %508 = arith.select %505, %503, %507 : vector<8x14xi1>, vector<8x14xf32>
    %cst_180 = arith.constant 1.000000e+00 : f32
    %509 = vector.broadcast %cst_180 : f32 to vector<8x14xf32>
    %510 = arith.addf %509, %508 : vector<8x14xf32>
    %511 = arith.mulf %473, %510 : vector<8x14xf32>
    %cst_181 = arith.constant dense<0.000000e+00> : vector<8x7xf32>
    %512 = tpu.matmul %511, %1, %cst_181 {dimension_numbers = #tpu.dot_dimension_numbers<[1], [0], [0], [1], [0, 0, 1, 1], [], []>} : vector<8x14xf32>, vector<14x7xf32>, vector<8x7xf32> -> vector<8x7xf32>
    %c0_182 = arith.constant 0 : index
    %c6 = arith.constant 6 : index
    %c0_183 = arith.constant 0 : index
    %c0_184 = arith.constant 0 : index
    %513 = vector.load %arg6[%c0_182, %c6, %c0_183, %c0_184] : memref<1x8x8x7xf32, #tpu.memory_space<vmem>>, vector<1x1x8x7xf32>
    %514 = vector.shape_cast %513 : vector<1x1x8x7xf32> to vector<8x7xf32>
    %515 = vector.shape_cast %512 : vector<8x7xf32> to vector<1x1x8x7xf32>
    tpu.vector_store %arg6[%c0_182, %c6, %c0_183, %c0_184], %515 {strides = array<i32>} : memref<1x8x8x7xf32, #tpu.memory_space<vmem>>, vector<1x1x8x7xf32>,
    %c8_i32_185 = arith.constant 8 : i32
    %516 = arith.muli %arg1, %c8_i32_185 : i32
    %c7_i32 = arith.constant 7 : i32
    %517 = arith.addi %516, %c7_i32 : i32
    %c13_i32_186 = arith.constant 13 : i32
    %518 = arith.minsi %517, %c13_i32_186 : i32
    %c1_i32_187 = arith.constant 1 : i32
    %519 = arith.muli %518, %c1_i32_187 : i32
    %c0_188 = arith.constant 0 : index
    %c0_189 = arith.constant 0 : index
    %520 = arith.index_cast %519 : i32 to index
    %c0_190 = arith.constant 0 : index
    %521 = vector.load %arg2[%c0_188, %c0_189, %520, %c0_190] : memref<1x4x16x16xf32, #tpu.memory_space<vmem>>, vector<1x4x3x16xf32>
    %522 = vector.shape_cast %521 : vector<1x4x3x16xf32> to vector<4x3x16xf32>
    %523 = vector.extract_strided_slice %522 {offsets = [0, 0, 0], sizes = [4, 1, 14], strides = [1, 1, 1]} : vector<4x3x16xf32> to vector<4x1x14xf32>
    %524 = vector.shape_cast %523 : vector<4x1x14xf32> to vector<4x14xf32>
    %525 = vector.extract_strided_slice %522 {offsets = [0, 0, 1], sizes = [4, 1, 14], strides = [1, 1, 1]} : vector<4x3x16xf32> to vector<4x1x14xf32>
    %526 = vector.shape_cast %525 : vector<4x1x14xf32> to vector<4x14xf32>
    %527 = vector.extract_strided_slice %522 {offsets = [0, 0, 2], sizes = [4, 1, 14], strides = [1, 1, 1]} : vector<4x3x16xf32> to vector<4x1x14xf32>
    %528 = vector.shape_cast %527 : vector<4x1x14xf32> to vector<4x14xf32>
    %529 = vector.extract_strided_slice %522 {offsets = [0, 1, 0], sizes = [4, 1, 14], strides = [1, 1, 1]} : vector<4x3x16xf32> to vector<4x1x14xf32>
    %530 = vector.shape_cast %529 : vector<4x1x14xf32> to vector<4x14xf32>
    %531 = vector.extract_strided_slice %522 {offsets = [0, 1, 1], sizes = [4, 1, 14], strides = [1, 1, 1]} : vector<4x3x16xf32> to vector<4x1x14xf32>
    %532 = vector.shape_cast %531 : vector<4x1x14xf32> to vector<4x14xf32>
    %533 = vector.extract_strided_slice %522 {offsets = [0, 1, 2], sizes = [4, 1, 14], strides = [1, 1, 1]} : vector<4x3x16xf32> to vector<4x1x14xf32>
    %534 = vector.shape_cast %533 : vector<4x1x14xf32> to vector<4x14xf32>
    %535 = vector.extract_strided_slice %522 {offsets = [0, 2, 0], sizes = [4, 1, 14], strides = [1, 1, 1]} : vector<4x3x16xf32> to vector<4x1x14xf32>
    %536 = vector.shape_cast %535 : vector<4x1x14xf32> to vector<4x14xf32>
    %537 = vector.extract_strided_slice %522 {offsets = [0, 2, 1], sizes = [4, 1, 14], strides = [1, 1, 1]} : vector<4x3x16xf32> to vector<4x1x14xf32>
    %538 = vector.shape_cast %537 : vector<4x1x14xf32> to vector<4x14xf32>
    %539 = vector.extract_strided_slice %522 {offsets = [0, 2, 2], sizes = [4, 1, 14], strides = [1, 1, 1]} : vector<4x3x16xf32> to vector<4x1x14xf32>
    %540 = vector.shape_cast %539 : vector<4x1x14xf32> to vector<4x14xf32>
    %541 = tpu.concatenate %524, %526, %528, %530, %532, %534, %536, %538, %540 in 0 : vector<4x14xf32>, vector<4x14xf32>, vector<4x14xf32>, vector<4x14xf32>, vector<4x14xf32>, vector<4x14xf32>, vector<4x14xf32>, vector<4x14xf32>, vector<4x14xf32> -> vector<36x14xf32>
    %542 = arith.truncf %541 : vector<36x14xf32> to vector<36x14xbf16>
    %cst_191 = arith.constant dense<0.000000e+00> : vector<8x14xf32>
    %543 = tpu.matmul %0, %542, %cst_191 {dimension_numbers = #tpu.dot_dimension_numbers<[1], [0], [0], [1], [0, 0, 1, 1], [], []>} : vector<8x36xbf16>, vector<36x14xbf16>, vector<8x14xf32> -> vector<8x14xf32>
    %544 = arith.addf %543, %4 : vector<8x14xf32>
    %cst_192 = arith.constant 5.000000e-01 : f32
    %545 = vector.broadcast %cst_192 : f32 to vector<8x14xf32>
    %546 = arith.mulf %545, %544 : vector<8x14xf32>
    %cst_193 = arith.constant 0.707106769 : f32
    %547 = vector.broadcast %cst_193 : f32 to vector<8x14xf32>
    %548 = arith.mulf %544, %547 : vector<8x14xf32>
    %549 = math.absf %548 : vector<8x14xf32>
    %cst_194 = arith.constant 0.327591091 : f32
    %550 = vector.broadcast %cst_194 : f32 to vector<8x14xf32>
    %551 = arith.mulf %550, %549 : vector<8x14xf32>
    %cst_195 = arith.constant 1.000000e+00 : f32
    %552 = vector.broadcast %cst_195 : f32 to vector<8x14xf32>
    %553 = arith.addf %552, %551 : vector<8x14xf32>
    %cst_196 = arith.constant 1.000000e+00 : f32
    %554 = vector.broadcast %cst_196 : f32 to vector<8x14xf32>
    %555 = arith.divf %554, %553 : vector<8x14xf32>
    %cst_197 = arith.constant 1.06140542 : f32
    %556 = vector.broadcast %cst_197 : f32 to vector<8x14xf32>
    %557 = arith.mulf %556, %555 : vector<8x14xf32>
    %cst_198 = arith.constant -1.45315206 : f32
    %558 = vector.broadcast %cst_198 : f32 to vector<8x14xf32>
    %559 = arith.addf %557, %558 : vector<8x14xf32>
    %560 = arith.mulf %559, %555 : vector<8x14xf32>
    %cst_199 = arith.constant 1.42141378 : f32
    %561 = vector.broadcast %cst_199 : f32 to vector<8x14xf32>
    %562 = arith.addf %560, %561 : vector<8x14xf32>
    %563 = arith.mulf %562, %555 : vector<8x14xf32>
    %cst_200 = arith.constant -0.284496725 : f32
    %564 = vector.broadcast %cst_200 : f32 to vector<8x14xf32>
    %565 = arith.addf %563, %564 : vector<8x14xf32>
    %566 = arith.mulf %565, %555 : vector<8x14xf32>
    %cst_201 = arith.constant 0.254829586 : f32
    %567 = vector.broadcast %cst_201 : f32 to vector<8x14xf32>
    %568 = arith.addf %566, %567 : vector<8x14xf32>
    %569 = arith.mulf %568, %555 : vector<8x14xf32>
    %cst_202 = arith.constant 0.000000e+00 : f32
    %570 = vector.broadcast %cst_202 : f32 to vector<8x14xf32>
    %571 = arith.subf %570, %549 : vector<8x14xf32>
    %572 = arith.mulf %571, %549 : vector<8x14xf32>
    %573 = math.exp %572 : vector<8x14xf32>
    %574 = arith.mulf %569, %573 : vector<8x14xf32>
    %cst_203 = arith.constant 1.000000e+00 : f32
    %575 = vector.broadcast %cst_203 : f32 to vector<8x14xf32>
    %576 = arith.subf %575, %574 : vector<8x14xf32>
    %cst_204 = arith.constant 0.000000e+00 : f32
    %577 = vector.broadcast %cst_204 : f32 to vector<8x14xf32>
    %578 = arith.cmpf oge, %548, %577 : vector<8x14xf32>
    %cst_205 = arith.constant 0.000000e+00 : f32
    %579 = vector.broadcast %cst_205 : f32 to vector<8x14xf32>
    %580 = arith.subf %579, %576 : vector<8x14xf32>
    %581 = arith.select %578, %576, %580 : vector<8x14xi1>, vector<8x14xf32>
    %cst_206 = arith.constant 1.000000e+00 : f32
    %582 = vector.broadcast %cst_206 : f32 to vector<8x14xf32>
    %583 = arith.addf %582, %581 : vector<8x14xf32>
    %584 = arith.mulf %546, %583 : vector<8x14xf32>
    %cst_207 = arith.constant dense<0.000000e+00> : vector<8x7xf32>
    %585 = tpu.matmul %584, %1, %cst_207 {dimension_numbers = #tpu.dot_dimension_numbers<[1], [0], [0], [1], [0, 0, 1, 1], [], []>} : vector<8x14xf32>, vector<14x7xf32>, vector<8x7xf32> -> vector<8x7xf32>
    %c0_208 = arith.constant 0 : index
    %c7 = arith.constant 7 : index
    %c0_209 = arith.constant 0 : index
    %c0_210 = arith.constant 0 : index
    %586 = vector.load %arg6[%c0_208, %c7, %c0_209, %c0_210] : memref<1x8x8x7xf32, #tpu.memory_space<vmem>>, vector<1x1x8x7xf32>
    %587 = vector.shape_cast %586 : vector<1x1x8x7xf32> to vector<8x7xf32>
    %588 = vector.shape_cast %585 : vector<8x7xf32> to vector<1x1x8x7xf32>
    tpu.vector_store %arg6[%c0_208, %c7, %c0_209, %c0_210], %588 {strides = array<i32>} : memref<1x8x8x7xf32, #tpu.memory_space<vmem>>, vector<1x1x8x7xf32>,
    return
  }
  func.func @transform_0(%arg0: i32, %arg1: i32) -> (i32, i32, i32, i32) {
    %c0_i32 = arith.constant 0 : i32
    %c0_i32_0 = arith.constant 0 : i32
    %c0_i32_1 = arith.constant 0 : i32
    %c0_i32_2 = arith.constant 0 : i32
    return %arg0, %c0_i32, %c0_i32_0, %c0_i32_1 : i32, i32, i32, i32
  }
  func.func @transform_1(%arg0: i32, %arg1: i32) -> (i32, i32) {
    %c0_i32 = arith.constant 0 : i32
    %c0_i32_0 = arith.constant 0 : i32
    %c0_i32_1 = arith.constant 0 : i32
    return %c0_i32, %c0_i32_0 : i32, i32
  }
  func.func @transform_2(%arg0: i32, %arg1: i32) -> (i32, i32) {
    %c0_i32 = arith.constant 0 : i32
    %c0_i32_0 = arith.constant 0 : i32
    %c0_i32_1 = arith.constant 0 : i32
    return %c0_i32, %c0_i32_0 : i32, i32
  }
  func.func @transform_3(%arg0: i32, %arg1: i32) -> (i32, i32) {
    %c0_i32 = arith.constant 0 : i32
    %c0_i32_0 = arith.constant 0 : i32
    %c0_i32_1 = arith.constant 0 : i32
    return %c0_i32, %c0_i32_0 : i32, i32
  }
  func.func @transform_4(%arg0: i32, %arg1: i32) -> (i32, i32, i32, i32) {
    %c0_i32 = arith.constant 0 : i32
    %c0_i32_0 = arith.constant 0 : i32
    %c0_i32_1 = arith.constant 0 : i32
    return %arg0, %arg1, %c0_i32, %c0_i32_0 : i32, i32, i32, i32
  }
}

</mosaic_0001>

<llo_original>
// kernel: tpu_custom_call.1
$region0: #{tpu_custom_call.1}
  #allocation0 [shape = 'u32[]', space=smem, size = 0x4, offset = 0x4, fixed_abs, tag = 'smem constant byte address 0x4 - core index']
  #allocation1 [shape = 'u32[72,128]{1,0:T(1,128)}', space=vmem, size = 0x9000, scoped, tag = 'internal scratch']
  %s0 = inlined_call_operand.hbm [shape: f32[2,4,16,16], index: 0, kind: input, shape index: {}]
  %s1 = inlined_call_operand.vmem [shape: bf16[8,36], index: 1, kind: input, shape index: {}]
  %s2 = inlined_call_operand.vmem [shape: f32[8,1], index: 2, kind: input, shape index: {}]
  %s3 = inlined_call_operand.vmem [shape: f32[14,7], index: 3, kind: input, shape index: {}]
  %s4 = inlined_call_operand.vmem [shape: f32[2,16,8,7], index: 4, kind: output, shape index: {}]
  %s5 = sld [smem:[#allocation0]]
  $region53: #{tpu_custom_call.1} parent=0
    _
  %s7 = ssub.s32 1, %s5
  %s8 = scalar_select 0, %s7, %s5
  $region1: #{tpu_custom_call.1} parent=0
    #allocation2 [shape = 'u8[65536]{0}', space=vmem, size = 0x10000, scoped, tag = 'input window, operand 0']
    #allocation3 [shape = 's32[2]{0}', space=sflag, size = 0x8, scoped, tag = 'scoped memory for tpu_custom_call.1']
    %9 = vsyncpa [#allocation3], 0
    %s10 = scalar_lea.sflag [#allocation3], 1
    %11 = vsyncpa %s10, 0
    loop: start=0, step=1, limit=6
    $region2: #{tpu_custom_call.1} parent=1 // loop_pre_header
      _
    $region3: #{tpu_custom_call.1} parent=1 // loop_header
      %s13 = sphi 0, %s17
      %p14 = scmp.ge.s32.totalorder %s13, 6
      %s20 = sphi 0, %s32
      %s21 = sphi 0, %s28
      %s22 = sphi 0, %s20
      %s23 = sphi 0, %s21
      %s24 = sphi 0, %s22
      %s25 = sphi 0, %s23
      %s35 = sphi 0, %s37
      %s38 = sphi 0, %s35
      %s39 = sphi 0, %s38
      %s55 = sphi 0, %s39
      %s59 = sphi 0, %s59
      %s61 = sphi 0, %s59
      %s62 = sphi 0, %s61
      %s76 = sphi 0, %s62
      %s80 = sphi 0, %s80
      %s82 = sphi 0, %s80
      %s83 = sphi 0, %s82
      %s97 = sphi 0, %s83
      %s101 = sphi 0, %s101
      %s103 = sphi 0, %s101
      %s104 = sphi 0, %s103
      %s118 = sphi 0, %s104
      %s126 = sphi 0, %s128
      %s129 = sphi 0, %s126
      %s130 = sphi 0, %s129
      %s146 = sphi 0, %s130
    $region4: #{tpu_custom_call.1} parent=1 // loop_header_branch
      %16 = sbr.rel (%p14) target = $region8
    $region5: #{tpu_custom_call.1} parent=1 // loop_body
      %s18 = ssub.s32 %s13, 1
      %s19 = ssub.s32 %s13, 2
      %s26 = sadd.s32 1, %s21
      %p27 = scmp.ge.s32.totalorder %s26, 2
      %s28 = scalar_select %p27, 0, %s26
      %s29 = sadd.s32 1, %s20
      %s30 = scalar_select %p27, %s29, %s20
      %p31 = scmp.ge.s32.totalorder %s30, 2
      %s32 = scalar_select %p31, 0, %s30
      %s33 = ssub.s32 %s20, %s32
      %p34 = scmp.eq.s32.totalorder %s33, 0
      %s36 = sadd.s32 %s35, 1
      %s37 = scalar_select %p34, %s35, %s36
      %p40 = pneg %p34
      %p41 = scmp.eq.s32.totalorder %s13, 3
      %p42 = por %p40, %p41
      %p43 = scmp.ne.s32.totalorder %s35, %s38
      %p44 = scmp.eq.s32.totalorder %s13, 0
      %p45 = por %p43, %p44
      %p46 = scmp.ne.s32.totalorder %s35, %s38
      %p47 = scmp.eq.s32.totalorder %s18, 3
      %p48 = por %p46, %p47
      %p49 = scmp.ne.s32.totalorder %s38, %s39
      %p50 = scmp.eq.s32.totalorder %s18, 0
      %p51 = por %p49, %p50
      %p52 = scmp.ne.s32.totalorder %s38, %s39
      %p53 = scmp.eq.s32.totalorder %s19, 3
      %p54 = por %p52, %p53
      %p56 = scmp.ne.s32.totalorder %s39, %s55
      %p57 = scmp.eq.s32.totalorder %s19, 0
      %p58 = por %p56, %p57
      %s60 = sadd.s32 %s59, 1
      %p63 = scmp.eq.s32.totalorder %s13, 3
      %p64 = scmp.ne.s32.totalorder %s59, %s61
      %p65 = scmp.eq.s32.totalorder %s13, 0
      %p66 = por %p64, %p65
      %p67 = scmp.ne.s32.totalorder %s59, %s61
      %p68 = scmp.eq.s32.totalorder %s18, 3
      %p69 = por %p67, %p68
      %p70 = scmp.ne.s32.totalorder %s61, %s62
      %p71 = scmp.eq.s32.totalorder %s18, 0
      %p72 = por %p70, %p71
      %p73 = scmp.ne.s32.totalorder %s61, %s62
      %p74 = scmp.eq.s32.totalorder %s19, 3
      %p75 = por %p73, %p74
      %p77 = scmp.ne.s32.totalorder %s62, %s76
      %p78 = scmp.eq.s32.totalorder %s19, 0
      %p79 = por %p77, %p78
      %s81 = sadd.s32 %s80, 1
      %p84 = scmp.eq.s32.totalorder %s13, 3
      %p85 = scmp.ne.s32.totalorder %s80, %s82
      %p86 = scmp.eq.s32.totalorder %s13, 0
      %p87 = por %p85, %p86
      %p88 = scmp.ne.s32.totalorder %s80, %s82
      %p89 = scmp.eq.s32.totalorder %s18, 3
      %p90 = por %p88, %p89
      %p91 = scmp.ne.s32.totalorder %s82, %s83
      %p92 = scmp.eq.s32.totalorder %s18, 0
      %p93 = por %p91, %p92
      %p94 = scmp.ne.s32.totalorder %s82, %s83
      %p95 = scmp.eq.s32.totalorder %s19, 3
      %p96 = por %p94, %p95
      %p98 = scmp.ne.s32.totalorder %s83, %s97
      %p99 = scmp.eq.s32.totalorder %s19, 0
      %p100 = por %p98, %p99
      %s102 = sadd.s32 %s101, 1
      %p105 = scmp.eq.s32.totalorder %s13, 3
      %p106 = scmp.ne.s32.totalorder %s101, %s103
      %p107 = scmp.eq.s32.totalorder %s13, 0
      %p108 = por %p106, %p107
      %p109 = scmp.ne.s32.totalorder %s101, %s103
      %p110 = scmp.eq.s32.totalorder %s18, 3
      %p111 = por %p109, %p110
      %p112 = scmp.ne.s32.totalorder %s103, %s104
      %p113 = scmp.eq.s32.totalorder %s18, 0
      %p114 = por %p112, %p113
      %p115 = scmp.ne.s32.totalorder %s103, %s104
      %p116 = scmp.eq.s32.totalorder %s19, 3
      %p117 = por %p115, %p116
      %p119 = scmp.ne.s32.totalorder %s104, %s118
      %p120 = scmp.eq.s32.totalorder %s19, 0
      %p121 = por %p119, %p120
      %s122 = ssub.s32 %s20, %s32
      %s123 = ssub.s32 %s21, %s28
      %s124 = sor.u32 %s122, %s123
      %p125 = scmp.eq.s32.totalorder %s124, 0
      %s127 = sadd.s32 %s126, 1
      %s128 = scalar_select %p125, %s126, %s127
      %p131 = pneg %p125
      %p132 = scmp.eq.s32.totalorder %s13, 3
      %p133 = por %p131, %p132
      %p134 = scmp.ne.s32.totalorder %s126, %s129
      %p135 = scmp.eq.s32.totalorder %s13, 0
      %p136 = por %p134, %p135
      %p137 = scmp.ne.s32.totalorder %s126, %s129
      %p138 = scmp.eq.s32.totalorder %s18, 3
      %p139 = por %p137, %p138
      %p140 = scmp.ne.s32.totalorder %s129, %s130
      %p141 = scmp.eq.s32.totalorder %s18, 0
      %p142 = por %p140, %p141
      %p143 = scmp.ne.s32.totalorder %s129, %s130
      %p144 = scmp.eq.s32.totalorder %s19, 3
      %p145 = por %p143, %p144
      %p147 = scmp.ne.s32.totalorder %s130, %s146
      %p148 = scmp.eq.s32.totalorder %s19, 0
      %p149 = por %p147, %p148
      %p150 = scmp.le.s32.totalorder 1, %s13
      %p151 = scmp.lt.s32.totalorder %s13, 5
      %p152 = pnand %p150, %p151
      %p153 = pneg %p152
      // Predicated region
      $region9: #{tpu_custom_call.1} parent=5 // pred_check
        _
      $region10: #{tpu_custom_call.1} parent=5 // pred_check_branch
        %155 = sbr.rel (%p152) target = $region12
      $region11: #{tpu_custom_call.1} parent=5 // pred_region
        %s156 = ssub.s32 %s13, 1
        // Predicated region
        $region13: #{tpu_custom_call.1} parent=11 // pred_check
          %p157 = pneg %p72
        $region14: #{tpu_custom_call.1} parent=11 // pred_check_branch
          %159 = sbr.rel (%p157) target = $region16
        $region15: #{tpu_custom_call.1} parent=11 // pred_region
          _
        $region16: #{tpu_custom_call.1} parent=11 // pred_fallthru
          _
        // Predicated region
        $region17: #{tpu_custom_call.1} parent=11 // pred_check
          %p160 = pneg %p93
        $region18: #{tpu_custom_call.1} parent=11 // pred_check_branch
          %162 = sbr.rel (%p160) target = $region20
        $region19: #{tpu_custom_call.1} parent=11 // pred_region
          _
        $region20: #{tpu_custom_call.1} parent=11 // pred_fallthru
          _
        // Predicated region
        $region21: #{tpu_custom_call.1} parent=11 // pred_check
          %p163 = pneg %p114
        $region22: #{tpu_custom_call.1} parent=11 // pred_check_branch
          %165 = sbr.rel (%p163) target = $region24
        $region23: #{tpu_custom_call.1} parent=11 // pred_region
          _
        $region24: #{tpu_custom_call.1} parent=11 // pred_fallthru
          _
      $region12: #{tpu_custom_call.1} parent=5 // pred_fallthru
        _
      %p166 = scmp.lt.s32.totalorder %s13, 4
      // Predicated region
      $region25: #{tpu_custom_call.1} parent=5 // pred_check
        %p167 = pneg %p166
      $region26: #{tpu_custom_call.1} parent=5 // pred_check_branch
        %169 = sbr.rel (%p167) target = $region28
      $region27: #{tpu_custom_call.1} parent=5 // pred_region
        // Predicated region
        $region29: #{tpu_custom_call.1} parent=27 // pred_check
          %p170 = pneg %p45
        $region30: #{tpu_custom_call.1} parent=27 // pred_check_branch
          %172 = sbr.rel (%p170) target = $region32
        $region31: #{tpu_custom_call.1} parent=27 // pred_region
          %s173 = sand.u32 %s35, 1
          %s174 = scalar_lea.sflag [#allocation3], %s173
          %s175 = sand.u32 %s35, 1
          %s176 = smul.addr %s175, 64
          %s177 = scalar_lea.vmem [#allocation2], %s176
          %179 = vsyncadd %s174, 0
          %s180 = smul.addr %s20, 8
          %s181 = smul.addr %s180, 8
          %s182 = scalar_lea.hbm %s0, %s181
          %s183 = sshll.u32 %s182, 4
          %s184 = int_to_ptr.hbm [resolvable:$true] %s183
          %s185 = sshll.u32 %s177, 4
          %s186 = int_to_ptr.vmem [resolvable:$true] %s185
          %191 = dma.hbm_to_vmem [thread:$0]  %s184, 1024, %s186, %s174, 128, 128, 8
        $region32: #{tpu_custom_call.1} parent=27 // pred_fallthru
          _
      $region28: #{tpu_custom_call.1} parent=5 // pred_fallthru
        _
      %p192 = scmp.le.s32.totalorder 1, %s13
      %p193 = scmp.lt.s32.totalorder %s13, 5
      %p194 = pnand %p192, %p193
      %p195 = pneg %p194
      // Predicated region
      $region33: #{tpu_custom_call.1} parent=5 // pred_check
        _
      $region34: #{tpu_custom_call.1} parent=5 // pred_check_branch
        %197 = sbr.rel (%p194) target = $region36
      $region35: #{tpu_custom_call.1} parent=5 // pred_region
        %s198 = ssub.s32 %s13, 1
        %s199 = sand.u32 %s38, 1
        %s200 = scalar_lea.sflag [#allocation3], %s199
        %s201 = sand.u32 %s38, 1
        %s202 = smul.addr %s201, 64
        %s203 = scalar_lea.vmem [#allocation2], %s202
        // Predicated region
        $region37: #{tpu_custom_call.1} parent=35 // pred_check
          %p204 = pneg %p51
        $region38: #{tpu_custom_call.1} parent=35 // pred_check_branch
          %206 = sbr.rel (%p204) target = $region40
        $region39: #{tpu_custom_call.1} parent=35 // pred_region
          %208 = dma.done %s200, 1024
        $region40: #{tpu_custom_call.1} parent=35 // pred_fallthru
          _
        %s209 = sand.u32 %s38, 1
        %s210 = scalar_lea.sflag [#allocation3], %s209
        %s211 = sand.u32 %s38, 1
        %s212 = smul.addr %s211, 64
        %s213 = scalar_lea.vmem [#allocation2], %s212
        %p214 = pneg %p51
        %p215 = pneg %p48
        %p216 = pneg %p72
        %p217 = pneg %p69
        %p218 = pneg %p93
        %p219 = pneg %p90
        %p220 = pneg %p114
        %p221 = pneg %p111
        %p222 = pneg %p142
        %p223 = pneg %p139
        %s224 = smul.u32 8, %s23
        %p225 = scmp.lt.s32.totalorder %s22, 1
        %s226 = scalar_select %p225, %s22, 1
        %p227 = scmp.lt.s32.totalorder %s224, 15
        %s228 = scalar_select %p227, %s224, 15
        %s229 = smul.addr %s226, 16
        %s230 = sadd.s32 %s228, %s229
        %s231 = smul.addr %s230, 8
        %s232 = scalar_lea.vmem %s4, %s231
        %s233 = smul.u32 8, %s23
        %p234 = scmp.lt.s32.totalorder %s22, 1
        %s235 = scalar_select %p234, %s22, 1
        %p236 = scmp.lt.s32.totalorder %s233, 15
        %s237 = scalar_select %p236, %s233, 15
        %s238 = smul.addr %s235, 16
        %s239 = sadd.s32 %s237, %s238
        %s240 = smul.addr %s239, 8
        %s241 = scalar_lea.vmem %s4, %s240
        %s242 = smul.u32 8, %s23
        %v244 = vld [vmem:[%s1] sm:$0xf]
        %v245 = vld [vmem:[%s3] sm:$0xff]
        %v246 = vld [vmem:[%s3 + $0x8] sm:$0x3f]
        %v247 = vld [vmem:[%s2] sm:$0xff]
        %249 = vset.pattern.permute.xlu0 0
        %250 = vperm.xlu0 %249, %v247
        %v251 = vpop.permute.xlu0 %250
        %s253 = smul.u32 %s23, 8
        %p254 = scmp.lt.s32.totalorder %s253, 13
        %s255 = scalar_select %p254, %s253, 13
        %s256 = scalar_lea.vmem %s203, %s255 [#allocation2]
        %v257 = vld [vmem:[%s256] sm:$0x7]
        %v258 = vld [vmem:[%s256 + $0x10] sm:$0x7]
        %v259 = vld [vmem:[%s256 + $0x20] sm:$0x7]
        %v260 = vld [vmem:[%s256 + $0x30] sm:$0x7]
        %v265 = vrot.slane %v258, 7
        %vm266 = vcmask 1041409
        %v267 = vsel %vm266, %v265, %v257
        %v268 = vrot.slane %v259, 6
        %vm269 = vcmask 1042434
        %v270 = vsel %vm269, %v268, %v267
        %v271 = vrot.slane %v260, 5
        %vm272 = vcmask 1043459
        %v273 = vsel %vm272, %v271, %v270
        %v275 = vrot.slane %v257, 4
        %v276 = vrot.slane %v258, 3
        %vm277 = vcmask 1045509
        %v278 = vsel %vm277, %v276, %v275
        %v279 = vrot.slane %v259, 2
        %vm280 = vcmask 1046534
        %v281 = vsel %vm280, %v279, %v278
        %v282 = vrot.slane %v260, 1
        %vm283 = vcmask 1047559
        %v284 = vsel %vm283, %v282, %v281
        %285 = vrot.lane.b32.xlu0 %v284, 127
        %v286 = vpop.permute.xlu0 %285
        %288 = vrot.lane.b32.xlu0 %v273, 126
        %v289 = vpop.permute.xlu0 %288
        %v291 = vrot.slane %v257, 5
        %v292 = vrot.slane %v258, 4
        %v293 = vsel %vm277, %v292, %v291
        %v294 = vrot.slane %v259, 3
        %v295 = vsel %vm280, %v294, %v293
        %v296 = vrot.slane %v260, 2
        %v297 = vsel %vm283, %v296, %v295
        %v299 = vrot.slane %v257, 1
        %v300 = vsel %vm266, %v258, %v299
        %v301 = vrot.slane %v259, 7
        %v302 = vsel %vm269, %v301, %v300
        %v303 = vrot.slane %v260, 6
        %v304 = vsel %vm272, %v303, %v302
        %305 = vrot.lane.b32.xlu0 %v304, 127
        %v306 = vpop.permute.xlu0 %305
        %308 = vrot.lane.b32.xlu0 %v297, 126
        %v309 = vpop.permute.xlu0 %308
        %v311 = vrot.slane %v257, 2
        %v312 = vrot.slane %v258, 1
        %v313 = vsel %vm266, %v312, %v311
        %v314 = vsel %vm269, %v259, %v313
        %v315 = vrot.slane %v260, 7
        %v316 = vsel %vm272, %v315, %v314
        %v318 = vrot.slane %v257, 6
        %v319 = vrot.slane %v258, 5
        %v320 = vsel %vm277, %v319, %v318
        %v321 = vrot.slane %v259, 4
        %v322 = vsel %vm280, %v321, %v320
        %v323 = vrot.slane %v260, 3
        %v324 = vsel %vm283, %v323, %v322
        %325 = vrot.lane.b32.xlu0 %v324, 127
        %v326 = vpop.permute.xlu0 %325
        %328 = vrot.lane.b32.xlu0 %v316, 126
        %v329 = vpop.permute.xlu0 %328
        %vm331 = vcmask 1043456
        %v332 = vsel %vm331, %v273, %v286
        %v333 = vsel %vm331, %v289, %v297
        %v334 = vsel %vm331, %v306, %v309
        %v335 = vsel %vm331, %v316, %v326
        %v336 = vpack.c.bf16 %v333, %v332
        %v337 = vpack.c.bf16 %v335, %v334
        %v338 = vpack.c.bf16 %v329, %v329
        %vm339 = vcmask 293888
        %v341 = vsel %vm339, %v244, 0
        %vm343 = vcmask 1041408
        %v345 = vsel %vm343, %v338, 0
        %347 = vmatpush.bf16.msra.mxu0 0
        %348 = vmatpush.bf16.msra.mxu0 0
        %349 = vmatpush.bf16.msra.mxu0 0
        %350 = vmatpush.bf16.msra.mxu0 0
        %351 = vmatpush.bf16.msra.mxu0 0
        %352 = vmatpush.bf16.msra.mxu0 %v345
        %353 = vmatpush.bf16.msra.mxu0 %v337
        %354 = vmatpush.bf16.msra.mxu0 %v336
        %355 = vmatmul.bf16.gmra.mxu0 %v341
        %v356 = vpop.f32.mrf.mxu0
        %v357 = vadd.f32 %v251, %v356
        %v358 = vpop.f32.mrf.mxu0
        %359 = vdwg.mxu0
        %v360 = vmul.f32 %v357, 0.5
        %v361 = vmul.f32 %v357, 0.70710677
        %v362 = vand.u32 2147483647, %v361
        %v363 = vmul.f32 %v362, 0.3275911
        %v364 = vadd.f32 %v363, 1.0
        %v365 = vrcp.pop %v364
        %v366 = vmul.f32 %v364, %v365
        %v367 = vsub.f32 1.0, %v366
        %v368 = vmul.f32 %v365, %v367
        %v369 = vadd.f32 %v365, %v368
        %vm370 = vweird.f32 %v364
        %vm371 = vweird.f32 %v365
        %vm372 = vmor %vm370, %vm371
        %v373 = vsel %vm372, %v365, %v369
        %v374 = vand.u32 2147483647, %v364
        %vm375 = vcmp.eq.f32.partialorder %v374, 8.507059e+37
        %v376 = vand.u32 %v364, 2147483648
        %v377 = vor.u32 1.1754944e-38, %v376
        %v378 = vsel %vm375, %v377, %v373
        %v379 = vmul.f32 1.0, %v378
        %v380 = vmul.f32 %v379, 1.0614054
        %v381 = vadd.f32 %v380, -1.4531521
        %v382 = vmul.f32 %v381, %v379
        %v383 = vadd.f32 %v382, 1.4214138
        %v384 = vmul.f32 %v383, %v379
        %v385 = vadd.f32 %v384, -0.28449672
        %v386 = vmul.f32 %v385, %v379
        %v387 = vadd.f32 %v386, 0.2548296
        %v388 = vmul.f32 %v387, %v379
        %v389 = vsub.f32 0.0, %v362
        %v390 = vmul.f32 %v389, %v362
        %v391 = vmul.f32 %v390, 1.442695
        %v392 = vpow.pop %v391
        %v393 = vmul.f32 %v388, %v392
        %v394 = vsub.f32 1.0, %v393
        %vm395 = vcmp.ge.f32.partialorder %v361, 0.0
        %v396 = vsub.f32 0.0, %v394
        %v397 = vsel %vm395, %v394, %v396
        %v398 = vadd.f32 %v397, 1.0
        %v399 = vmul.f32 %v360, %v398
        %vm400 = vcmask 113664
        %v402 = vsel %vm400, %v399, 0
        %vm404 = vcmask 1045504
        %v406 = vsel %vm404, %v246, 0
        %408 = vmatpush.msra.mxu0 0.0
        %409 = vmatpush.msra.mxu0 0.0
        %410 = vmatpush.msra.mxu0 0.0
        %411 = vmatpush.msra.mxu0 0.0
        %412 = vmatpush.msra.mxu0 0.0
        %413 = vmatpush.msra.mxu0 0.0
        %414 = vmatpush.msra.mxu0 0.0
        %415 = vmatpush.msra.mxu0 0.0
        %416 = vmatpush.msra.mxu0 0.0
        %417 = vmatpush.msra.mxu0 0.0
        %418 = vmatpush.msra.mxu0 0.0
        %419 = vmatpush.msra.mxu0 0.0
        %420 = vmatpush.msra.mxu0 0.0
        %421 = vmatpush.msra.mxu0 0.0
        %422 = vmatpush.msra.mxu0 %v406
        %423 = vmatpush.msra.mxu0 %v245
        %424 = vmatmul.f32.gmra.mxu0 %v402
        %v425 = vpop.f32.mrf.mxu0
        %v426 = vadd.f32 0.0, %v425
        %427 = vdwg.mxu0
        %vm428 = vcmask 56320
        %429 = vst.msk [vmem:[%s241] sm:$0xff] %vm428, %v426
        %s430 = sadd.s32 %s253, 1
        %p431 = scmp.lt.s32.totalorder %s430, 13
        %s432 = scalar_select %p431, %s430, 13
        %s433 = scalar_lea.vmem %s203, %s432 [#allocation2]
        %v434 = vld [vmem:[%s433] sm:$0x7]
        %v435 = vld [vmem:[%s433 + $0x10] sm:$0x7]
        %v436 = vld [vmem:[%s433 + $0x20] sm:$0x7]
        %v437 = vld [vmem:[%s433 + $0x30] sm:$0x7]
        %v442 = vrot.slane %v435, 7
        %v443 = vsel %vm266, %v442, %v434
        %v444 = vrot.slane %v436, 6
        %v445 = vsel %vm269, %v444, %v443
        %v446 = vrot.slane %v437, 5
        %v447 = vsel %vm272, %v446, %v445
        %v449 = vrot.slane %v434, 4
        %v450 = vrot.slane %v435, 3
        %v451 = vsel %vm277, %v450, %v449
        %v452 = vrot.slane %v436, 2
        %v453 = vsel %vm280, %v452, %v451
        %v454 = vrot.slane %v437, 1
        %v455 = vsel %vm283, %v454, %v453
        %456 = vrot.lane.b32.xlu0 %v455, 127
        %v457 = vpop.permute.xlu0 %456
        %459 = vrot.lane.b32.xlu0 %v447, 126
        %v460 = vpop.permute.xlu0 %459
        %v462 = vrot.slane %v434, 5
        %v463 = vrot.slane %v435, 4
        %v464 = vsel %vm277, %v463, %v462
        %v465 = vrot.slane %v436, 3
        %v466 = vsel %vm280, %v465, %v464
        %v467 = vrot.slane %v437, 2
        %v468 = vsel %vm283, %v467, %v466
        %v470 = vrot.slane %v434, 1
        %v471 = vsel %vm266, %v435, %v470
        %v472 = vrot.slane %v436, 7
        %v473 = vsel %vm269, %v472, %v471
        %v474 = vrot.slane %v437, 6
        %v475 = vsel %vm272, %v474, %v473
        %476 = vrot.lane.b32.xlu0 %v475, 127
        %v477 = vpop.permute.xlu0 %476
        %479 = vrot.lane.b32.xlu0 %v468, 126
        %v480 = vpop.permute.xlu0 %479
        %v482 = vrot.slane %v434, 2
        %v483 = vrot.slane %v435, 1
        %v484 = vsel %vm266, %v483, %v482
        %v485 = vsel %vm269, %v436, %v484
        %v486 = vrot.slane %v437, 7
        %v487 = vsel %vm272, %v486, %v485
        %v489 = vrot.slane %v434, 6
        %v490 = vrot.slane %v435, 5
        %v491 = vsel %vm277, %v490, %v489
        %v492 = vrot.slane %v436, 4
        %v493 = vsel %vm280, %v492, %v491
        %v494 = vrot.slane %v437, 3
        %v495 = vsel %vm283, %v494, %v493
        %496 = vrot.lane.b32.xlu0 %v495, 127
        %v497 = vpop.permute.xlu0 %496
        %499 = vrot.lane.b32.xlu0 %v487, 126
        %v500 = vpop.permute.xlu0 %499
        %v502 = vsel %vm331, %v447, %v457
        %v503 = vsel %vm331, %v460, %v468
        %v504 = vsel %vm331, %v477, %v480
        %v505 = vsel %vm331, %v487, %v497
        %v506 = vpack.c.bf16 %v503, %v502
        %v507 = vpack.c.bf16 %v505, %v504
        %v508 = vpack.c.bf16 %v500, %v500
        %v510 = vsel %vm343, %v508, 0
        %512 = vmatpush.bf16.msra.mxu0 0
        %513 = vmatpush.bf16.msra.mxu0 0
        %514 = vmatpush.bf16.msra.mxu0 0
        %515 = vmatpush.bf16.msra.mxu0 0
        %516 = vmatpush.bf16.msra.mxu0 0
        %517 = vmatpush.bf16.msra.mxu0 %v510
        %518 = vmatpush.bf16.msra.mxu0 %v507
        %519 = vmatpush.bf16.msra.mxu0 %v506
        %520 = vmatmul.bf16.gmra.mxu0 %v341
        %v521 = vpop.f32.mrf.mxu0
        %v522 = vadd.f32 %v251, %v521
        %v523 = vpop.f32.mrf.mxu0
        %524 = vdwg.mxu0
        %v525 = vmul.f32 %v522, 0.5
        %v526 = vmul.f32 %v522, 0.70710677
        %v527 = vand.u32 2147483647, %v526
        %v528 = vmul.f32 %v527, 0.3275911
        %v529 = vadd.f32 %v528, 1.0
        %v530 = vrcp.pop %v529
        %v531 = vmul.f32 %v529, %v530
        %v532 = vsub.f32 1.0, %v531
        %v533 = vmul.f32 %v530, %v532
        %v534 = vadd.f32 %v530, %v533
        %vm535 = vweird.f32 %v529
        %vm536 = vweird.f32 %v530
        %vm537 = vmor %vm535, %vm536
        %v538 = vsel %vm537, %v530, %v534
        %v539 = vand.u32 2147483647, %v529
        %vm540 = vcmp.eq.f32.partialorder %v539, 8.507059e+37
        %v541 = vand.u32 %v529, 2147483648
        %v542 = vor.u32 1.1754944e-38, %v541
        %v543 = vsel %vm540, %v542, %v538
        %v544 = vmul.f32 1.0, %v543
        %v545 = vmul.f32 %v544, 1.0614054
        %v546 = vadd.f32 %v545, -1.4531521
        %v547 = vmul.f32 %v546, %v544
        %v548 = vadd.f32 %v547, 1.4214138
        %v549 = vmul.f32 %v548, %v544
        %v550 = vadd.f32 %v549, -0.28449672
        %v551 = vmul.f32 %v550, %v544
        %v552 = vadd.f32 %v551, 0.2548296
        %v553 = vmul.f32 %v552, %v544
        %v554 = vsub.f32 0.0, %v527
        %v555 = vmul.f32 %v554, %v527
        %v556 = vmul.f32 %v555, 1.442695
        %v557 = vpow.pop %v556
        %v558 = vmul.f32 %v553, %v557
        %v559 = vsub.f32 1.0, %v558
        %vm560 = vcmp.ge.f32.partialorder %v526, 0.0
        %v561 = vsub.f32 0.0, %v559
        %v562 = vsel %vm560, %v559, %v561
        %v563 = vadd.f32 %v562, 1.0
        %v564 = vmul.f32 %v525, %v563
        %v566 = vsel %vm400, %v564, 0
        %568 = vmatpush.msra.mxu0 0.0
        %569 = vmatpush.msra.mxu0 0.0
        %570 = vmatpush.msra.mxu0 0.0
        %571 = vmatpush.msra.mxu0 0.0
        %572 = vmatpush.msra.mxu0 0.0
        %573 = vmatpush.msra.mxu0 0.0
        %574 = vmatpush.msra.mxu0 0.0
        %575 = vmatpush.msra.mxu0 0.0
        %576 = vmatpush.msra.mxu0 0.0
        %577 = vmatpush.msra.mxu0 0.0
        %578 = vmatpush.msra.mxu0 0.0
        %579 = vmatpush.msra.mxu0 0.0
        %580 = vmatpush.msra.mxu0 0.0
        %581 = vmatpush.msra.mxu0 0.0
        %582 = vmatpush.msra.mxu0 %v406
        %583 = vmatpush.msra.mxu0 %v245
        %584 = vmatmul.f32.gmra.mxu0 %v566
        %v585 = vpop.f32.mrf.mxu0
        %v586 = vadd.f32 0.0, %v585
        %587 = vdwg.mxu0
        %s588 = scalar_lea.vmem %s241, 8
        %589 = vst.msk [vmem:[%s588] sm:$0xff] %vm428, %v586
        %s590 = sadd.s32 %s253, 2
        %p591 = scmp.lt.s32.totalorder %s590, 13
        %s592 = scalar_select %p591, %s590, 13
        %s593 = scalar_lea.vmem %s203, %s592 [#allocation2]
        %v594 = vld [vmem:[%s593] sm:$0x7]
        %v595 = vld [vmem:[%s593 + $0x10] sm:$0x7]
        %v596 = vld [vmem:[%s593 + $0x20] sm:$0x7]
        %v597 = vld [vmem:[%s593 + $0x30] sm:$0x7]
        %v602 = vrot.slane %v595, 7
        %v603 = vsel %vm266, %v602, %v594
        %v604 = vrot.slane %v596, 6
        %v605 = vsel %vm269, %v604, %v603
        %v606 = vrot.slane %v597, 5
        %v607 = vsel %vm272, %v606, %v605
        %v609 = vrot.slane %v594, 4
        %v610 = vrot.slane %v595, 3
        %v611 = vsel %vm277, %v610, %v609
        %v612 = vrot.slane %v596, 2
        %v613 = vsel %vm280, %v612, %v611
        %v614 = vrot.slane %v597, 1
        %v615 = vsel %vm283, %v614, %v613
        %616 = vrot.lane.b32.xlu0 %v615, 127
        %v617 = vpop.permute.xlu0 %616
        %619 = vrot.lane.b32.xlu0 %v607, 126
        %v620 = vpop.permute.xlu0 %619
        %v622 = vrot.slane %v594, 5
        %v623 = vrot.slane %v595, 4
        %v624 = vsel %vm277, %v623, %v622
        %v625 = vrot.slane %v596, 3
        %v626 = vsel %vm280, %v625, %v624
        %v627 = vrot.slane %v597, 2
        %v628 = vsel %vm283, %v627, %v626
        %v630 = vrot.slane %v594, 1
        %v631 = vsel %vm266, %v595, %v630
        %v632 = vrot.slane %v596, 7
        %v633 = vsel %vm269, %v632, %v631
        %v634 = vrot.slane %v597, 6
        %v635 = vsel %vm272, %v634, %v633
        %636 = vrot.lane.b32.xlu0 %v635, 127
        %v637 = vpop.permute.xlu0 %636
        %639 = vrot.lane.b32.xlu0 %v628, 126
        %v640 = vpop.permute.xlu0 %639
        %v642 = vrot.slane %v594, 2
        %v643 = vrot.slane %v595, 1
        %v644 = vsel %vm266, %v643, %v642
        %v645 = vsel %vm269, %v596, %v644
        %v646 = vrot.slane %v597, 7
        %v647 = vsel %vm272, %v646, %v645
        %v649 = vrot.slane %v594, 6
        %v650 = vrot.slane %v595, 5
        %v651 = vsel %vm277, %v650, %v649
        %v652 = vrot.slane %v596, 4
        %v653 = vsel %vm280, %v652, %v651
        %v654 = vrot.slane %v597, 3
        %v655 = vsel %vm283, %v654, %v653
        %656 = vrot.lane.b32.xlu0 %v655, 127
        %v657 = vpop.permute.xlu0 %656
        %659 = vrot.lane.b32.xlu0 %v647, 126
        %v660 = vpop.permute.xlu0 %659
        %v662 = vsel %vm331, %v607, %v617
        %v663 = vsel %vm331, %v620, %v628
        %v664 = vsel %vm331, %v637, %v640
        %v665 = vsel %vm331, %v647, %v657
        %v666 = vpack.c.bf16 %v663, %v662
        %v667 = vpack.c.bf16 %v665, %v664
        %v668 = vpack.c.bf16 %v660, %v660
        %v670 = vsel %vm343, %v668, 0
        %672 = vmatpush.bf16.msra.mxu0 0
        %673 = vmatpush.bf16.msra.mxu0 0
        %674 = vmatpush.bf16.msra.mxu0 0
        %675 = vmatpush.bf16.msra.mxu0 0
        %676 = vmatpush.bf16.msra.mxu0 0
        %677 = vmatpush.bf16.msra.mxu0 %v670
        %678 = vmatpush.bf16.msra.mxu0 %v667
        %679 = vmatpush.bf16.msra.mxu0 %v666
        %680 = vmatmul.bf16.gmra.mxu0 %v341
        %v681 = vpop.f32.mrf.mxu0
        %v682 = vadd.f32 %v251, %v681
        %v683 = vpop.f32.mrf.mxu0
        %684 = vdwg.mxu0
        %v685 = vmul.f32 %v682, 0.5
        %v686 = vmul.f32 %v682, 0.70710677
        %v687 = vand.u32 2147483647, %v686
        %v688 = vmul.f32 %v687, 0.3275911
        %v689 = vadd.f32 %v688, 1.0
        %v690 = vrcp.pop %v689
        %v691 = vmul.f32 %v689, %v690
        %v692 = vsub.f32 1.0, %v691
        %v693 = vmul.f32 %v690, %v692
        %v694 = vadd.f32 %v690, %v693
        %vm695 = vweird.f32 %v689
        %vm696 = vweird.f32 %v690
        %vm697 = vmor %vm695, %vm696
        %v698 = vsel %vm697, %v690, %v694
        %v699 = vand.u32 2147483647, %v689
        %vm700 = vcmp.eq.f32.partialorder %v699, 8.507059e+37
        %v701 = vand.u32 %v689, 2147483648
        %v702 = vor.u32 1.1754944e-38, %v701
        %v703 = vsel %vm700, %v702, %v698
        %v704 = vmul.f32 1.0, %v703
        %v705 = vmul.f32 %v704, 1.0614054
        %v706 = vadd.f32 %v705, -1.4531521
        %v707 = vmul.f32 %v706, %v704
        %v708 = vadd.f32 %v707, 1.4214138
        %v709 = vmul.f32 %v708, %v704
        %v710 = vadd.f32 %v709, -0.28449672
        %v711 = vmul.f32 %v710, %v704
        %v712 = vadd.f32 %v711, 0.2548296
        %v713 = vmul.f32 %v712, %v704
        %v714 = vsub.f32 0.0, %v687
        %v715 = vmul.f32 %v714, %v687
        %v716 = vmul.f32 %v715, 1.442695
        %v717 = vpow.pop %v716
        %v718 = vmul.f32 %v713, %v717
        %v719 = vsub.f32 1.0, %v718
        %vm720 = vcmp.ge.f32.partialorder %v686, 0.0
        %v721 = vsub.f32 0.0, %v719
        %v722 = vsel %vm720, %v719, %v721
        %v723 = vadd.f32 %v722, 1.0
        %v724 = vmul.f32 %v685, %v723
        %v726 = vsel %vm400, %v724, 0
        %728 = vmatpush.msra.mxu0 0.0
        %729 = vmatpush.msra.mxu0 0.0
        %730 = vmatpush.msra.mxu0 0.0
        %731 = vmatpush.msra.mxu0 0.0
        %732 = vmatpush.msra.mxu0 0.0
        %733 = vmatpush.msra.mxu0 0.0
        %734 = vmatpush.msra.mxu0 0.0
        %735 = vmatpush.msra.mxu0 0.0
        %736 = vmatpush.msra.mxu0 0.0
        %737 = vmatpush.msra.mxu0 0.0
        %738 = vmatpush.msra.mxu0 0.0
        %739 = vmatpush.msra.mxu0 0.0
        %740 = vmatpush.msra.mxu0 0.0
        %741 = vmatpush.msra.mxu0 0.0
        %742 = vmatpush.msra.mxu0 %v406
        %743 = vmatpush.msra.mxu0 %v245
        %744 = vmatmul.f32.gmra.mxu0 %v726
        %v745 = vpop.f32.mrf.mxu0
        %v746 = vadd.f32 0.0, %v745
        %747 = vdwg.mxu0
        %s748 = scalar_lea.vmem %s241, 16
        %749 = vst.msk [vmem:[%s748] sm:$0xff] %vm428, %v746
        %s750 = sadd.s32 %s253, 3
        %p751 = scmp.lt.s32.totalorder %s750, 13
        %s752 = scalar_select %p751, %s750, 13
        %s753 = scalar_lea.vmem %s203, %s752 [#allocation2]
        %v754 = vld [vmem:[%s753] sm:$0x7]
        %v755 = vld [vmem:[%s753 + $0x10] sm:$0x7]
        %v756 = vld [vmem:[%s753 + $0x20] sm:$0x7]
        %v757 = vld [vmem:[%s753 + $0x30] sm:$0x7]
        %v762 = vrot.slane %v755, 7
        %v763 = vsel %vm266, %v762, %v754
        %v764 = vrot.slane %v756, 6
        %v765 = vsel %vm269, %v764, %v763
        %v766 = vrot.slane %v757, 5
        %v767 = vsel %vm272, %v766, %v765
        %v769 = vrot.slane %v754, 4
        %v770 = vrot.slane %v755, 3
        %v771 = vsel %vm277, %v770, %v769
        %v772 = vrot.slane %v756, 2
        %v773 = vsel %vm280, %v772, %v771
        %v774 = vrot.slane %v757, 1
        %v775 = vsel %vm283, %v774, %v773
        %776 = vrot.lane.b32.xlu0 %v775, 127
        %v777 = vpop.permute.xlu0 %776
        %779 = vrot.lane.b32.xlu0 %v767, 126
        %v780 = vpop.permute.xlu0 %779
        %v782 = vrot.slane %v754, 5
        %v783 = vrot.slane %v755, 4
        %v784 = vsel %vm277, %v783, %v782
        %v785 = vrot.slane %v756, 3
        %v786 = vsel %vm280, %v785, %v784
        %v787 = vrot.slane %v757, 2
        %v788 = vsel %vm283, %v787, %v786
        %v790 = vrot.slane %v754, 1
        %v791 = vsel %vm266, %v755, %v790
        %v792 = vrot.slane %v756, 7
        %v793 = vsel %vm269, %v792, %v791
        %v794 = vrot.slane %v757, 6
        %v795 = vsel %vm272, %v794, %v793
        %796 = vrot.lane.b32.xlu0 %v795, 127
        %v797 = vpop.permute.xlu0 %796
        %799 = vrot.lane.b32.xlu0 %v788, 126
        %v800 = vpop.permute.xlu0 %799
        %v802 = vrot.slane %v754, 2
        %v803 = vrot.slane %v755, 1
        %v804 = vsel %vm266, %v803, %v802
        %v805 = vsel %vm269, %v756, %v804
        %v806 = vrot.slane %v757, 7
        %v807 = vsel %vm272, %v806, %v805
        %v809 = vrot.slane %v754, 6
        %v810 = vrot.slane %v755, 5
        %v811 = vsel %vm277, %v810, %v809
        %v812 = vrot.slane %v756, 4
        %v813 = vsel %vm280, %v812, %v811
        %v814 = vrot.slane %v757, 3
        %v815 = vsel %vm283, %v814, %v813
        %816 = vrot.lane.b32.xlu0 %v815, 127
        %v817 = vpop.permute.xlu0 %816
        %819 = vrot.lane.b32.xlu0 %v807, 126
        %v820 = vpop.permute.xlu0 %819
        %v822 = vsel %vm331, %v767, %v777
        %v823 = vsel %vm331, %v780, %v788
        %v824 = vsel %vm331, %v797, %v800
        %v825 = vsel %vm331, %v807, %v817
        %v826 = vpack.c.bf16 %v823, %v822
        %v827 = vpack.c.bf16 %v825, %v824
        %v828 = vpack.c.bf16 %v820, %v820
        %v830 = vsel %vm343, %v828, 0
        %832 = vmatpush.bf16.msra.mxu0 0
        %833 = vmatpush.bf16.msra.mxu0 0
        %834 = vmatpush.bf16.msra.mxu0 0
        %835 = vmatpush.bf16.msra.mxu0 0
        %836 = vmatpush.bf16.msra.mxu0 0
        %837 = vmatpush.bf16.msra.mxu0 %v830
        %838 = vmatpush.bf16.msra.mxu0 %v827
        %839 = vmatpush.bf16.msra.mxu0 %v826
        %840 = vmatmul.bf16.gmra.mxu0 %v341
        %v841 = vpop.f32.mrf.mxu0
        %v842 = vadd.f32 %v251, %v841
        %v843 = vpop.f32.mrf.mxu0
        %844 = vdwg.mxu0
        %v845 = vmul.f32 %v842, 0.5
        %v846 = vmul.f32 %v842, 0.70710677
        %v847 = vand.u32 2147483647, %v846
        %v848 = vmul.f32 %v847, 0.3275911
        %v849 = vadd.f32 %v848, 1.0
        %v850 = vrcp.pop %v849
        %v851 = vmul.f32 %v849, %v850
        %v852 = vsub.f32 1.0, %v851
        %v853 = vmul.f32 %v850, %v852
        %v854 = vadd.f32 %v850, %v853
        %vm855 = vweird.f32 %v849
        %vm856 = vweird.f32 %v850
        %vm857 = vmor %vm855, %vm856
        %v858 = vsel %vm857, %v850, %v854
        %v859 = vand.u32 2147483647, %v849
        %vm860 = vcmp.eq.f32.partialorder %v859, 8.507059e+37
        %v861 = vand.u32 %v849, 2147483648
        %v862 = vor.u32 1.1754944e-38, %v861
        %v863 = vsel %vm860, %v862, %v858
        %v864 = vmul.f32 1.0, %v863
        %v865 = vmul.f32 %v864, 1.0614054
        %v866 = vadd.f32 %v865, -1.4531521
        %v867 = vmul.f32 %v866, %v864
        %v868 = vadd.f32 %v867, 1.4214138
        %v869 = vmul.f32 %v868, %v864
        %v870 = vadd.f32 %v869, -0.28449672
        %v871 = vmul.f32 %v870, %v864
        %v872 = vadd.f32 %v871, 0.2548296
        %v873 = vmul.f32 %v872, %v864
        %v874 = vsub.f32 0.0, %v847
        %v875 = vmul.f32 %v874, %v847
        %v876 = vmul.f32 %v875, 1.442695
        %v877 = vpow.pop %v876
        %v878 = vmul.f32 %v873, %v877
        %v879 = vsub.f32 1.0, %v878
        %vm880 = vcmp.ge.f32.partialorder %v846, 0.0
        %v881 = vsub.f32 0.0, %v879
        %v882 = vsel %vm880, %v879, %v881
        %v883 = vadd.f32 %v882, 1.0
        %v884 = vmul.f32 %v845, %v883
        %v886 = vsel %vm400, %v884, 0
        %888 = vmatpush.msra.mxu0 0.0
        %889 = vmatpush.msra.mxu0 0.0
        %890 = vmatpush.msra.mxu0 0.0
        %891 = vmatpush.msra.mxu0 0.0
        %892 = vmatpush.msra.mxu0 0.0
        %893 = vmatpush.msra.mxu0 0.0
        %894 = vmatpush.msra.mxu0 0.0
        %895 = vmatpush.msra.mxu0 0.0
        %896 = vmatpush.msra.mxu0 0.0
        %897 = vmatpush.msra.mxu0 0.0
        %898 = vmatpush.msra.mxu0 0.0
        %899 = vmatpush.msra.mxu0 0.0
        %900 = vmatpush.msra.mxu0 0.0
        %901 = vmatpush.msra.mxu0 0.0
        %902 = vmatpush.msra.mxu0 %v406
        %903 = vmatpush.msra.mxu0 %v245
        %904 = vmatmul.f32.gmra.mxu0 %v886
        %v905 = vpop.f32.mrf.mxu0
        %v906 = vadd.f32 0.0, %v905
        %907 = vdwg.mxu0
        %s908 = scalar_lea.vmem %s241, 24
        %909 = vst.msk [vmem:[%s908] sm:$0xff] %vm428, %v906
        %s910 = sadd.s32 %s253, 4
        %p911 = scmp.lt.s32.totalorder %s910, 13
        %s912 = scalar_select %p911, %s910, 13
        %s913 = scalar_lea.vmem %s203, %s912 [#allocation2]
        %v914 = vld [vmem:[%s913] sm:$0x7]
        %v915 = vld [vmem:[%s913 + $0x10] sm:$0x7]
        %v916 = vld [vmem:[%s913 + $0x20] sm:$0x7]
        %v917 = vld [vmem:[%s913 + $0x30] sm:$0x7]
        %v922 = vrot.slane %v915, 7
        %v923 = vsel %vm266, %v922, %v914
        %v924 = vrot.slane %v916, 6
        %v925 = vsel %vm269, %v924, %v923
        %v926 = vrot.slane %v917, 5
        %v927 = vsel %vm272, %v926, %v925
        %v929 = vrot.slane %v914, 4
        %v930 = vrot.slane %v915, 3
        %v931 = vsel %vm277, %v930, %v929
        %v932 = vrot.slane %v916, 2
        %v933 = vsel %vm280, %v932, %v931
        %v934 = vrot.slane %v917, 1
        %v935 = vsel %vm283, %v934, %v933
        %936 = vrot.lane.b32.xlu0 %v935, 127
        %v937 = vpop.permute.xlu0 %936
        %939 = vrot.lane.b32.xlu0 %v927, 126
        %v940 = vpop.permute.xlu0 %939
        %v942 = vrot.slane %v914, 5
        %v943 = vrot.slane %v915, 4
        %v944 = vsel %vm277, %v943, %v942
        %v945 = vrot.slane %v916, 3
        %v946 = vsel %vm280, %v945, %v944
        %v947 = vrot.slane %v917, 2
        %v948 = vsel %vm283, %v947, %v946
        %v950 = vrot.slane %v914, 1
        %v951 = vsel %vm266, %v915, %v950
        %v952 = vrot.slane %v916, 7
        %v953 = vsel %vm269, %v952, %v951
        %v954 = vrot.slane %v917, 6
        %v955 = vsel %vm272, %v954, %v953
        %956 = vrot.lane.b32.xlu0 %v955, 127
        %v957 = vpop.permute.xlu0 %956
        %959 = vrot.lane.b32.xlu0 %v948, 126
        %v960 = vpop.permute.xlu0 %959
        %v962 = vrot.slane %v914, 2
        %v963 = vrot.slane %v915, 1
        %v964 = vsel %vm266, %v963, %v962
        %v965 = vsel %vm269, %v916, %v964
        %v966 = vrot.slane %v917, 7
        %v967 = vsel %vm272, %v966, %v965
        %v969 = vrot.slane %v914, 6
        %v970 = vrot.slane %v915, 5
        %v971 = vsel %vm277, %v970, %v969
        %v972 = vrot.slane %v916, 4
        %v973 = vsel %vm280, %v972, %v971
        %v974 = vrot.slane %v917, 3
        %v975 = vsel %vm283, %v974, %v973
        %976 = vrot.lane.b32.xlu0 %v975, 127
        %v977 = vpop.permute.xlu0 %976
        %979 = vrot.lane.b32.xlu0 %v967, 126
        %v980 = vpop.permute.xlu0 %979
        %v982 = vsel %vm331, %v927, %v937
        %v983 = vsel %vm331, %v940, %v948
        %v984 = vsel %vm331, %v957, %v960
        %v985 = vsel %vm331, %v967, %v977
        %v986 = vpack.c.bf16 %v983, %v982
        %v987 = vpack.c.bf16 %v985, %v984
        %v988 = vpack.c.bf16 %v980, %v980
        %v990 = vsel %vm343, %v988, 0
        %992 = vmatpush.bf16.msra.mxu0 0
        %993 = vmatpush.bf16.msra.mxu0 0
        %994 = vmatpush.bf16.msra.mxu0 0
        %995 = vmatpush.bf16.msra.mxu0 0
        %996 = vmatpush.bf16.msra.mxu0 0
        %997 = vmatpush.bf16.msra.mxu0 %v990
        %998 = vmatpush.bf16.msra.mxu0 %v987
        %999 = vmatpush.bf16.msra.mxu0 %v986
        %1000 = vmatmul.bf16.gmra.mxu0 %v341
        %v1001 = vpop.f32.mrf.mxu0
        %v1002 = vadd.f32 %v251, %v1001
        %v1003 = vpop.f32.mrf.mxu0
        %1004 = vdwg.mxu0
        %v1005 = vmul.f32 %v1002, 0.5
        %v1006 = vmul.f32 %v1002, 0.70710677
        %v1007 = vand.u32 2147483647, %v1006
        %v1008 = vmul.f32 %v1007, 0.3275911
        %v1009 = vadd.f32 %v1008, 1.0
        %v1010 = vrcp.pop %v1009
        %v1011 = vmul.f32 %v1009, %v1010
        %v1012 = vsub.f32 1.0, %v1011
        %v1013 = vmul.f32 %v1010, %v1012
        %v1014 = vadd.f32 %v1010, %v1013
        %vm1015 = vweird.f32 %v1009
        %vm1016 = vweird.f32 %v1010
        %vm1017 = vmor %vm1015, %vm1016
        %v1018 = vsel %vm1017, %v1010, %v1014
        %v1019 = vand.u32 2147483647, %v1009
        %vm1020 = vcmp.eq.f32.partialorder %v1019, 8.507059e+37
        %v1021 = vand.u32 %v1009, 2147483648
        %v1022 = vor.u32 1.1754944e-38, %v1021
        %v1023 = vsel %vm1020, %v1022, %v1018
        %v1024 = vmul.f32 1.0, %v1023
        %v1025 = vmul.f32 %v1024, 1.0614054
        %v1026 = vadd.f32 %v1025, -1.4531521
        %v1027 = vmul.f32 %v1026, %v1024
        %v1028 = vadd.f32 %v1027, 1.4214138
        %v1029 = vmul.f32 %v1028, %v1024
        %v1030 = vadd.f32 %v1029, -0.28449672
        %v1031 = vmul.f32 %v1030, %v1024
        %v1032 = vadd.f32 %v1031, 0.2548296
        %v1033 = vmul.f32 %v1032, %v1024
        %v1034 = vsub.f32 0.0, %v1007
        %v1035 = vmul.f32 %v1034, %v1007
        %v1036 = vmul.f32 %v1035, 1.442695
        %v1037 = vpow.pop %v1036
        %v1038 = vmul.f32 %v1033, %v1037
        %v1039 = vsub.f32 1.0, %v1038
        %vm1040 = vcmp.ge.f32.partialorder %v1006, 0.0
        %v1041 = vsub.f32 0.0, %v1039
        %v1042 = vsel %vm1040, %v1039, %v1041
        %v1043 = vadd.f32 %v1042, 1.0
        %v1044 = vmul.f32 %v1005, %v1043
        %v1046 = vsel %vm400, %v1044, 0
        %1048 = vmatpush.msra.mxu0 0.0
        %1049 = vmatpush.msra.mxu0 0.0
        %1050 = vmatpush.msra.mxu0 0.0
        %1051 = vmatpush.msra.mxu0 0.0
        %1052 = vmatpush.msra.mxu0 0.0
        %1053 = vmatpush.msra.mxu0 0.0
        %1054 = vmatpush.msra.mxu0 0.0
        %1055 = vmatpush.msra.mxu0 0.0
        %1056 = vmatpush.msra.mxu0 0.0
        %1057 = vmatpush.msra.mxu0 0.0
        %1058 = vmatpush.msra.mxu0 0.0
        %1059 = vmatpush.msra.mxu0 0.0
        %1060 = vmatpush.msra.mxu0 0.0
        %1061 = vmatpush.msra.mxu0 0.0
        %1062 = vmatpush.msra.mxu0 %v406
        %1063 = vmatpush.msra.mxu0 %v245
        %1064 = vmatmul.f32.gmra.mxu0 %v1046
        %v1065 = vpop.f32.mrf.mxu0
        %v1066 = vadd.f32 0.0, %v1065
        %1067 = vdwg.mxu0
        %s1068 = scalar_lea.vmem %s241, 32
        %1069 = vst.msk [vmem:[%s1068] sm:$0xff] %vm428, %v1066
        %s1070 = sadd.s32 %s253, 5
        %p1071 = scmp.lt.s32.totalorder %s1070, 13
        %s1072 = scalar_select %p1071, %s1070, 13
        %s1073 = scalar_lea.vmem %s203, %s1072 [#allocation2]
        %v1074 = vld [vmem:[%s1073] sm:$0x7]
        %v1075 = vld [vmem:[%s1073 + $0x10] sm:$0x7]
        %v1076 = vld [vmem:[%s1073 + $0x20] sm:$0x7]
        %v1077 = vld [vmem:[%s1073 + $0x30] sm:$0x7]
        %v1082 = vrot.slane %v1075, 7
        %v1083 = vsel %vm266, %v1082, %v1074
        %v1084 = vrot.slane %v1076, 6
        %v1085 = vsel %vm269, %v1084, %v1083
        %v1086 = vrot.slane %v1077, 5
        %v1087 = vsel %vm272, %v1086, %v1085
        %v1089 = vrot.slane %v1074, 4
        %v1090 = vrot.slane %v1075, 3
        %v1091 = vsel %vm277, %v1090, %v1089
        %v1092 = vrot.slane %v1076, 2
        %v1093 = vsel %vm280, %v1092, %v1091
        %v1094 = vrot.slane %v1077, 1
        %v1095 = vsel %vm283, %v1094, %v1093
        %1096 = vrot.lane.b32.xlu0 %v1095, 127
        %v1097 = vpop.permute.xlu0 %1096
        %1099 = vrot.lane.b32.xlu0 %v1087, 126
        %v1100 = vpop.permute.xlu0 %1099
        %v1102 = vrot.slane %v1074, 5
        %v1103 = vrot.slane %v1075, 4
        %v1104 = vsel %vm277, %v1103, %v1102
        %v1105 = vrot.slane %v1076, 3
        %v1106 = vsel %vm280, %v1105, %v1104
        %v1107 = vrot.slane %v1077, 2
        %v1108 = vsel %vm283, %v1107, %v1106
        %v1110 = vrot.slane %v1074, 1
        %v1111 = vsel %vm266, %v1075, %v1110
        %v1112 = vrot.slane %v1076, 7
        %v1113 = vsel %vm269, %v1112, %v1111
        %v1114 = vrot.slane %v1077, 6
        %v1115 = vsel %vm272, %v1114, %v1113
        %1116 = vrot.lane.b32.xlu0 %v1115, 127
        %v1117 = vpop.permute.xlu0 %1116
        %1119 = vrot.lane.b32.xlu0 %v1108, 126
        %v1120 = vpop.permute.xlu0 %1119
        %v1122 = vrot.slane %v1074, 2
        %v1123 = vrot.slane %v1075, 1
        %v1124 = vsel %vm266, %v1123, %v1122
        %v1125 = vsel %vm269, %v1076, %v1124
        %v1126 = vrot.slane %v1077, 7
        %v1127 = vsel %vm272, %v1126, %v1125
        %v1129 = vrot.slane %v1074, 6
        %v1130 = vrot.slane %v1075, 5
        %v1131 = vsel %vm277, %v1130, %v1129
        %v1132 = vrot.slane %v1076, 4
        %v1133 = vsel %vm280, %v1132, %v1131
        %v1134 = vrot.slane %v1077, 3
        %v1135 = vsel %vm283, %v1134, %v1133
        %1136 = vrot.lane.b32.xlu0 %v1135, 127
        %v1137 = vpop.permute.xlu0 %1136
        %1139 = vrot.lane.b32.xlu0 %v1127, 126
        %v1140 = vpop.permute.xlu0 %1139
        %v1142 = vsel %vm331, %v1087, %v1097
        %v1143 = vsel %vm331, %v1100, %v1108
        %v1144 = vsel %vm331, %v1117, %v1120
        %v1145 = vsel %vm331, %v1127, %v1137
        %v1146 = vpack.c.bf16 %v1143, %v1142
        %v1147 = vpack.c.bf16 %v1145, %v1144
        %v1148 = vpack.c.bf16 %v1140, %v1140
        %v1150 = vsel %vm343, %v1148, 0
        %1152 = vmatpush.bf16.msra.mxu0 0
        %1153 = vmatpush.bf16.msra.mxu0 0
        %1154 = vmatpush.bf16.msra.mxu0 0
        %1155 = vmatpush.bf16.msra.mxu0 0
        %1156 = vmatpush.bf16.msra.mxu0 0
        %1157 = vmatpush.bf16.msra.mxu0 %v1150
        %1158 = vmatpush.bf16.msra.mxu0 %v1147
        %1159 = vmatpush.bf16.msra.mxu0 %v1146
        %1160 = vmatmul.bf16.gmra.mxu0 %v341
        %v1161 = vpop.f32.mrf.mxu0
        %v1162 = vadd.f32 %v251, %v1161
        %v1163 = vpop.f32.mrf.mxu0
        %1164 = vdwg.mxu0
        %v1165 = vmul.f32 %v1162, 0.5
        %v1166 = vmul.f32 %v1162, 0.70710677
        %v1167 = vand.u32 2147483647, %v1166
        %v1168 = vmul.f32 %v1167, 0.3275911
        %v1169 = vadd.f32 %v1168, 1.0
        %v1170 = vrcp.pop %v1169
        %v1171 = vmul.f32 %v1169, %v1170
        %v1172 = vsub.f32 1.0, %v1171
        %v1173 = vmul.f32 %v1170, %v1172
        %v1174 = vadd.f32 %v1170, %v1173
        %vm1175 = vweird.f32 %v1169
        %vm1176 = vweird.f32 %v1170
        %vm1177 = vmor %vm1175, %vm1176
        %v1178 = vsel %vm1177, %v1170, %v1174
        %v1179 = vand.u32 2147483647, %v1169
        %vm1180 = vcmp.eq.f32.partialorder %v1179, 8.507059e+37
        %v1181 = vand.u32 %v1169, 2147483648
        %v1182 = vor.u32 1.1754944e-38, %v1181
        %v1183 = vsel %vm1180, %v1182, %v1178
        %v1184 = vmul.f32 1.0, %v1183
        %v1185 = vmul.f32 %v1184, 1.0614054
        %v1186 = vadd.f32 %v1185, -1.4531521
        %v1187 = vmul.f32 %v1186, %v1184
        %v1188 = vadd.f32 %v1187, 1.4214138
        %v1189 = vmul.f32 %v1188, %v1184
        %v1190 = vadd.f32 %v1189, -0.28449672
        %v1191 = vmul.f32 %v1190, %v1184
        %v1192 = vadd.f32 %v1191, 0.2548296
        %v1193 = vmul.f32 %v1192, %v1184
        %v1194 = vsub.f32 0.0, %v1167
        %v1195 = vmul.f32 %v1194, %v1167
        %v1196 = vmul.f32 %v1195, 1.442695
        %v1197 = vpow.pop %v1196
        %v1198 = vmul.f32 %v1193, %v1197
        %v1199 = vsub.f32 1.0, %v1198
        %vm1200 = vcmp.ge.f32.partialorder %v1166, 0.0
        %v1201 = vsub.f32 0.0, %v1199
        %v1202 = vsel %vm1200, %v1199, %v1201
        %v1203 = vadd.f32 %v1202, 1.0
        %v1204 = vmul.f32 %v1165, %v1203
        %v1206 = vsel %vm400, %v1204, 0
        %1208 = vmatpush.msra.mxu0 0.0
        %1209 = vmatpush.msra.mxu0 0.0
        %1210 = vmatpush.msra.mxu0 0.0
        %1211 = vmatpush.msra.mxu0 0.0
        %1212 = vmatpush.msra.mxu0 0.0
        %1213 = vmatpush.msra.mxu0 0.0
        %1214 = vmatpush.msra.mxu0 0.0
        %1215 = vmatpush.msra.mxu0 0.0
        %1216 = vmatpush.msra.mxu0 0.0
        %1217 = vmatpush.msra.mxu0 0.0
        %1218 = vmatpush.msra.mxu0 0.0
        %1219 = vmatpush.msra.mxu0 0.0
        %1220 = vmatpush.msra.mxu0 0.0
        %1221 = vmatpush.msra.mxu0 0.0
        %1222 = vmatpush.msra.mxu0 %v406
        %1223 = vmatpush.msra.mxu0 %v245
        %1224 = vmatmul.f32.gmra.mxu0 %v1206
        %v1225 = vpop.f32.mrf.mxu0
        %v1226 = vadd.f32 0.0, %v1225
        %1227 = vdwg.mxu0
        %s1228 = scalar_lea.vmem %s241, 40
        %1229 = vst.msk [vmem:[%s1228] sm:$0xff] %vm428, %v1226
        %s1230 = sadd.s32 %s253, 6
        %p1231 = scmp.lt.s32.totalorder %s1230, 13
        %s1232 = scalar_select %p1231, %s1230, 13
        %s1233 = scalar_lea.vmem %s203, %s1232 [#allocation2]
        %v1234 = vld [vmem:[%s1233] sm:$0x7]
        %v1235 = vld [vmem:[%s1233 + $0x10] sm:$0x7]
        %v1236 = vld [vmem:[%s1233 + $0x20] sm:$0x7]
        %v1237 = vld [vmem:[%s1233 + $0x30] sm:$0x7]
        %v1242 = vrot.slane %v1235, 7
        %v1243 = vsel %vm266, %v1242, %v1234
        %v1244 = vrot.slane %v1236, 6
        %v1245 = vsel %vm269, %v1244, %v1243
        %v1246 = vrot.slane %v1237, 5
        %v1247 = vsel %vm272, %v1246, %v1245
        %v1249 = vrot.slane %v1234, 4
        %v1250 = vrot.slane %v1235, 3
        %v1251 = vsel %vm277, %v1250, %v1249
        %v1252 = vrot.slane %v1236, 2
        %v1253 = vsel %vm280, %v1252, %v1251
        %v1254 = vrot.slane %v1237, 1
        %v1255 = vsel %vm283, %v1254, %v1253
        %1256 = vrot.lane.b32.xlu0 %v1255, 127
        %v1257 = vpop.permute.xlu0 %1256
        %1259 = vrot.lane.b32.xlu0 %v1247, 126
        %v1260 = vpop.permute.xlu0 %1259
        %v1262 = vrot.slane %v1234, 5
        %v1263 = vrot.slane %v1235, 4
        %v1264 = vsel %vm277, %v1263, %v1262
        %v1265 = vrot.slane %v1236, 3
        %v1266 = vsel %vm280, %v1265, %v1264
        %v1267 = vrot.slane %v1237, 2
        %v1268 = vsel %vm283, %v1267, %v1266
        %v1270 = vrot.slane %v1234, 1
        %v1271 = vsel %vm266, %v1235, %v1270
        %v1272 = vrot.slane %v1236, 7
        %v1273 = vsel %vm269, %v1272, %v1271
        %v1274 = vrot.slane %v1237, 6
        %v1275 = vsel %vm272, %v1274, %v1273
        %1276 = vrot.lane.b32.xlu0 %v1275, 127
        %v1277 = vpop.permute.xlu0 %1276
        %1279 = vrot.lane.b32.xlu0 %v1268, 126
        %v1280 = vpop.permute.xlu0 %1279
        %v1282 = vrot.slane %v1234, 2
        %v1283 = vrot.slane %v1235, 1
        %v1284 = vsel %vm266, %v1283, %v1282
        %v1285 = vsel %vm269, %v1236, %v1284
        %v1286 = vrot.slane %v1237, 7
        %v1287 = vsel %vm272, %v1286, %v1285
        %v1289 = vrot.slane %v1234, 6
        %v1290 = vrot.slane %v1235, 5
        %v1291 = vsel %vm277, %v1290, %v1289
        %v1292 = vrot.slane %v1236, 4
        %v1293 = vsel %vm280, %v1292, %v1291
        %v1294 = vrot.slane %v1237, 3
        %v1295 = vsel %vm283, %v1294, %v1293
        %1296 = vrot.lane.b32.xlu0 %v1295, 127
        %v1297 = vpop.permute.xlu0 %1296
        %1299 = vrot.lane.b32.xlu0 %v1287, 126
        %v1300 = vpop.permute.xlu0 %1299
        %v1302 = vsel %vm331, %v1247, %v1257
        %v1303 = vsel %vm331, %v1260, %v1268
        %v1304 = vsel %vm331, %v1277, %v1280
        %v1305 = vsel %vm331, %v1287, %v1297
        %v1306 = vpack.c.bf16 %v1303, %v1302
        %v1307 = vpack.c.bf16 %v1305, %v1304
        %v1308 = vpack.c.bf16 %v1300, %v1300
        %v1310 = vsel %vm343, %v1308, 0
        %1312 = vmatpush.bf16.msra.mxu0 0
        %1313 = vmatpush.bf16.msra.mxu0 0
        %1314 = vmatpush.bf16.msra.mxu0 0
        %1315 = vmatpush.bf16.msra.mxu0 0
        %1316 = vmatpush.bf16.msra.mxu0 0
        %1317 = vmatpush.bf16.msra.mxu0 %v1310
        %1318 = vmatpush.bf16.msra.mxu0 %v1307
        %1319 = vmatpush.bf16.msra.mxu0 %v1306
        %1320 = vmatmul.bf16.gmra.mxu0 %v341
        %v1321 = vpop.f32.mrf.mxu0
        %v1322 = vadd.f32 %v251, %v1321
        %v1323 = vpop.f32.mrf.mxu0
        %1324 = vdwg.mxu0
        %v1325 = vmul.f32 %v1322, 0.5
        %v1326 = vmul.f32 %v1322, 0.70710677
        %v1327 = vand.u32 2147483647, %v1326
        %v1328 = vmul.f32 %v1327, 0.3275911
        %v1329 = vadd.f32 %v1328, 1.0
        %v1330 = vrcp.pop %v1329
        %v1331 = vmul.f32 %v1329, %v1330
        %v1332 = vsub.f32 1.0, %v1331
        %v1333 = vmul.f32 %v1330, %v1332
        %v1334 = vadd.f32 %v1330, %v1333
        %vm1335 = vweird.f32 %v1329
        %vm1336 = vweird.f32 %v1330
        %vm1337 = vmor %vm1335, %vm1336
        %v1338 = vsel %vm1337, %v1330, %v1334
        %v1339 = vand.u32 2147483647, %v1329
        %vm1340 = vcmp.eq.f32.partialorder %v1339, 8.507059e+37
        %v1341 = vand.u32 %v1329, 2147483648
        %v1342 = vor.u32 1.1754944e-38, %v1341
        %v1343 = vsel %vm1340, %v1342, %v1338
        %v1344 = vmul.f32 1.0, %v1343
        %v1345 = vmul.f32 %v1344, 1.0614054
        %v1346 = vadd.f32 %v1345, -1.4531521
        %v1347 = vmul.f32 %v1346, %v1344
        %v1348 = vadd.f32 %v1347, 1.4214138
        %v1349 = vmul.f32 %v1348, %v1344
        %v1350 = vadd.f32 %v1349, -0.28449672
        %v1351 = vmul.f32 %v1350, %v1344
        %v1352 = vadd.f32 %v1351, 0.2548296
        %v1353 = vmul.f32 %v1352, %v1344
        %v1354 = vsub.f32 0.0, %v1327
        %v1355 = vmul.f32 %v1354, %v1327
        %v1356 = vmul.f32 %v1355, 1.442695
        %v1357 = vpow.pop %v1356
        %v1358 = vmul.f32 %v1353, %v1357
        %v1359 = vsub.f32 1.0, %v1358
        %vm1360 = vcmp.ge.f32.partialorder %v1326, 0.0
        %v1361 = vsub.f32 0.0, %v1359
        %v1362 = vsel %vm1360, %v1359, %v1361
        %v1363 = vadd.f32 %v1362, 1.0
        %v1364 = vmul.f32 %v1325, %v1363
        %v1366 = vsel %vm400, %v1364, 0
        %1368 = vmatpush.msra.mxu0 0.0
        %1369 = vmatpush.msra.mxu0 0.0
        %1370 = vmatpush.msra.mxu0 0.0
        %1371 = vmatpush.msra.mxu0 0.0
        %1372 = vmatpush.msra.mxu0 0.0
        %1373 = vmatpush.msra.mxu0 0.0
        %1374 = vmatpush.msra.mxu0 0.0
        %1375 = vmatpush.msra.mxu0 0.0
        %1376 = vmatpush.msra.mxu0 0.0
        %1377 = vmatpush.msra.mxu0 0.0
        %1378 = vmatpush.msra.mxu0 0.0
        %1379 = vmatpush.msra.mxu0 0.0
        %1380 = vmatpush.msra.mxu0 0.0
        %1381 = vmatpush.msra.mxu0 0.0
        %1382 = vmatpush.msra.mxu0 %v406
        %1383 = vmatpush.msra.mxu0 %v245
        %1384 = vmatmul.f32.gmra.mxu0 %v1366
        %v1385 = vpop.f32.mrf.mxu0
        %v1386 = vadd.f32 0.0, %v1385
        %1387 = vdwg.mxu0
        %s1388 = scalar_lea.vmem %s241, 48
        %1389 = vst.msk [vmem:[%s1388] sm:$0xff] %vm428, %v1386
        %s1390 = sadd.s32 %s253, 7
        %p1391 = scmp.lt.s32.totalorder %s1390, 13
        %s1392 = scalar_select %p1391, %s1390, 13
        %s1393 = scalar_lea.vmem %s203, %s1392 [#allocation2]
        %v1394 = vld [vmem:[%s1393] sm:$0x7]
        %v1395 = vld [vmem:[%s1393 + $0x10] sm:$0x7]
        %v1396 = vld [vmem:[%s1393 + $0x20] sm:$0x7]
        %v1397 = vld [vmem:[%s1393 + $0x30] sm:$0x7]
        %v1402 = vrot.slane %v1395, 7
        %v1403 = vsel %vm266, %v1402, %v1394
        %v1404 = vrot.slane %v1396, 6
        %v1405 = vsel %vm269, %v1404, %v1403
        %v1406 = vrot.slane %v1397, 5
        %v1407 = vsel %vm272, %v1406, %v1405
        %v1409 = vrot.slane %v1394, 4
        %v1410 = vrot.slane %v1395, 3
        %v1411 = vsel %vm277, %v1410, %v1409
        %v1412 = vrot.slane %v1396, 2
        %v1413 = vsel %vm280, %v1412, %v1411
        %v1414 = vrot.slane %v1397, 1
        %v1415 = vsel %vm283, %v1414, %v1413
        %1416 = vrot.lane.b32.xlu0 %v1415, 127
        %v1417 = vpop.permute.xlu0 %1416
        %1419 = vrot.lane.b32.xlu0 %v1407, 126
        %v1420 = vpop.permute.xlu0 %1419
        %v1422 = vrot.slane %v1394, 5
        %v1423 = vrot.slane %v1395, 4
        %v1424 = vsel %vm277, %v1423, %v1422
        %v1425 = vrot.slane %v1396, 3
        %v1426 = vsel %vm280, %v1425, %v1424
        %v1427 = vrot.slane %v1397, 2
        %v1428 = vsel %vm283, %v1427, %v1426
        %v1430 = vrot.slane %v1394, 1
        %v1431 = vsel %vm266, %v1395, %v1430
        %v1432 = vrot.slane %v1396, 7
        %v1433 = vsel %vm269, %v1432, %v1431
        %v1434 = vrot.slane %v1397, 6
        %v1435 = vsel %vm272, %v1434, %v1433
        %1436 = vrot.lane.b32.xlu0 %v1435, 127
        %v1437 = vpop.permute.xlu0 %1436
        %1439 = vrot.lane.b32.xlu0 %v1428, 126
        %v1440 = vpop.permute.xlu0 %1439
        %v1442 = vrot.slane %v1394, 2
        %v1443 = vrot.slane %v1395, 1
        %v1444 = vsel %vm266, %v1443, %v1442
        %v1445 = vsel %vm269, %v1396, %v1444
        %v1446 = vrot.slane %v1397, 7
        %v1447 = vsel %vm272, %v1446, %v1445
        %v1449 = vrot.slane %v1394, 6
        %v1450 = vrot.slane %v1395, 5
        %v1451 = vsel %vm277, %v1450, %v1449
        %v1452 = vrot.slane %v1396, 4
        %v1453 = vsel %vm280, %v1452, %v1451
        %v1454 = vrot.slane %v1397, 3
        %v1455 = vsel %vm283, %v1454, %v1453
        %1456 = vrot.lane.b32.xlu0 %v1455, 127
        %v1457 = vpop.permute.xlu0 %1456
        %1459 = vrot.lane.b32.xlu0 %v1447, 126
        %v1460 = vpop.permute.xlu0 %1459
        %v1462 = vsel %vm331, %v1407, %v1417
        %v1463 = vsel %vm331, %v1420, %v1428
        %v1464 = vsel %vm331, %v1437, %v1440
        %v1465 = vsel %vm331, %v1447, %v1457
        %v1466 = vpack.c.bf16 %v1463, %v1462
        %v1467 = vpack.c.bf16 %v1465, %v1464
        %v1468 = vpack.c.bf16 %v1460, %v1460
        %v1470 = vsel %vm343, %v1468, 0
        %1472 = vmatpush.bf16.msra.mxu0 0
        %1473 = vmatpush.bf16.msra.mxu0 0
        %1474 = vmatpush.bf16.msra.mxu0 0
        %1475 = vmatpush.bf16.msra.mxu0 0
        %1476 = vmatpush.bf16.msra.mxu0 0
        %1477 = vmatpush.bf16.msra.mxu0 %v1470
        %1478 = vmatpush.bf16.msra.mxu0 %v1467
        %1479 = vmatpush.bf16.msra.mxu0 %v1466
        %1480 = vmatmul.bf16.gmra.mxu0 %v341
        %v1481 = vpop.f32.mrf.mxu0
        %v1482 = vadd.f32 %v251, %v1481
        %v1483 = vpop.f32.mrf.mxu0
        %1484 = vdwg.mxu0
        %v1485 = vmul.f32 %v1482, 0.5
        %v1486 = vmul.f32 %v1482, 0.70710677
        %v1487 = vand.u32 2147483647, %v1486
        %v1488 = vmul.f32 %v1487, 0.3275911
        %v1489 = vadd.f32 %v1488, 1.0
        %v1490 = vrcp.pop %v1489
        %v1491 = vmul.f32 %v1489, %v1490
        %v1492 = vsub.f32 1.0, %v1491
        %v1493 = vmul.f32 %v1490, %v1492
        %v1494 = vadd.f32 %v1490, %v1493
        %vm1495 = vweird.f32 %v1489
        %vm1496 = vweird.f32 %v1490
        %vm1497 = vmor %vm1495, %vm1496
        %v1498 = vsel %vm1497, %v1490, %v1494
        %v1499 = vand.u32 2147483647, %v1489
        %vm1500 = vcmp.eq.f32.partialorder %v1499, 8.507059e+37
        %v1501 = vand.u32 %v1489, 2147483648
        %v1502 = vor.u32 1.1754944e-38, %v1501
        %v1503 = vsel %vm1500, %v1502, %v1498
        %v1504 = vmul.f32 1.0, %v1503
        %v1505 = vmul.f32 %v1504, 1.0614054
        %v1506 = vadd.f32 %v1505, -1.4531521
        %v1507 = vmul.f32 %v1506, %v1504
        %v1508 = vadd.f32 %v1507, 1.4214138
        %v1509 = vmul.f32 %v1508, %v1504
        %v1510 = vadd.f32 %v1509, -0.28449672
        %v1511 = vmul.f32 %v1510, %v1504
        %v1512 = vadd.f32 %v1511, 0.2548296
        %v1513 = vmul.f32 %v1512, %v1504
        %v1514 = vsub.f32 0.0, %v1487
        %v1515 = vmul.f32 %v1514, %v1487
        %v1516 = vmul.f32 %v1515, 1.442695
        %v1517 = vpow.pop %v1516
        %v1518 = vmul.f32 %v1513, %v1517
        %v1519 = vsub.f32 1.0, %v1518
        %vm1520 = vcmp.ge.f32.partialorder %v1486, 0.0
        %v1521 = vsub.f32 0.0, %v1519
        %v1522 = vsel %vm1520, %v1519, %v1521
        %v1523 = vadd.f32 %v1522, 1.0
        %v1524 = vmul.f32 %v1485, %v1523
        %v1526 = vsel %vm400, %v1524, 0
        %1528 = vmatpush.msra.mxu0 0.0
        %1529 = vmatpush.msra.mxu0 0.0
        %1530 = vmatpush.msra.mxu0 0.0
        %1531 = vmatpush.msra.mxu0 0.0
        %1532 = vmatpush.msra.mxu0 0.0
        %1533 = vmatpush.msra.mxu0 0.0
        %1534 = vmatpush.msra.mxu0 0.0
        %1535 = vmatpush.msra.mxu0 0.0
        %1536 = vmatpush.msra.mxu0 0.0
        %1537 = vmatpush.msra.mxu0 0.0
        %1538 = vmatpush.msra.mxu0 0.0
        %1539 = vmatpush.msra.mxu0 0.0
        %1540 = vmatpush.msra.mxu0 0.0
        %1541 = vmatpush.msra.mxu0 0.0
        %1542 = vmatpush.msra.mxu0 %v406
        %1543 = vmatpush.msra.mxu0 %v245
        %1544 = vmatmul.f32.gmra.mxu0 %v1526
        %v1545 = vpop.f32.mrf.mxu0
        %v1546 = vadd.f32 0.0, %v1545
        %1547 = vdwg.mxu0
        %s1548 = scalar_lea.vmem %s241, 56
        %1549 = vst.msk [vmem:[%s1548] sm:$0xff] %vm428, %v1546
        %s1550 = smul.u32 8, %s23
        %p1551 = scmp.lt.s32.totalorder %s22, 1
        %s1552 = scalar_select %p1551, %s22, 1
        %p1553 = scmp.lt.s32.totalorder %s1550, 15
        %s1554 = scalar_select %p1553, %s1550, 15
        %s1555 = smul.addr %s1552, 16
        %s1556 = sadd.s32 %s1554, %s1555
        %s1557 = smul.addr %s1556, 8
        %s1558 = scalar_lea.vmem %s4, %s1557
        // Predicated region
        $region41: #{tpu_custom_call.1} parent=35 // pred_check
          %p1559 = pneg %p139
        $region42: #{tpu_custom_call.1} parent=35 // pred_check_branch
          %1561 = sbr.rel (%p1559) target = $region44
        $region43: #{tpu_custom_call.1} parent=35 // pred_region
          %s1562 = smul.u32 8, %s23
        $region44: #{tpu_custom_call.1} parent=35 // pred_fallthru
          _
      $region36: #{tpu_custom_call.1} parent=5 // pred_fallthru
        _
      %p1563 = scmp.le.s32.totalorder 2, %s13
      // Predicated region
      $region45: #{tpu_custom_call.1} parent=5 // pred_check
        %p1564 = pneg %p1563
      $region46: #{tpu_custom_call.1} parent=5 // pred_check_branch
        %1566 = sbr.rel (%p1564) target = $region48
      $region47: #{tpu_custom_call.1} parent=5 // pred_region
        %s1567 = ssub.s32 %s13, 2
        // Predicated region
        $region49: #{tpu_custom_call.1} parent=47 // pred_check
          %p1568 = pneg %p145
        $region50: #{tpu_custom_call.1} parent=47 // pred_check_branch
          %1570 = sbr.rel (%p1568) target = $region52
        $region51: #{tpu_custom_call.1} parent=47 // pred_region
          %s1571 = smul.u32 8, %s25
          %p1572 = scmp.lt.s32.totalorder %s24, 1
          %s1573 = scalar_select %p1572, %s24, 1
          %p1574 = scmp.lt.s32.totalorder %s1571, 15
          %s1575 = scalar_select %p1574, %s1571, 15
          %s1576 = smul.addr %s1573, 16
          %s1577 = sadd.s32 %s1575, %s1576
          %s1578 = smul.addr %s1577, 8
          %s1579 = scalar_lea.vmem %s4, %s1578
        $region52: #{tpu_custom_call.1} parent=47 // pred_fallthru
          _
      $region48: #{tpu_custom_call.1} parent=5 // pred_fallthru
        _
    $region6: #{tpu_custom_call.1} parent=1 // loop_footer
      %s17 = sadd.s32 1, %s13
    $region7: #{tpu_custom_call.1} parent=1 // loop_footer_branch
      %12 = sbr.rel target = $region3
    $region8: #{tpu_custom_call.1} parent=1 // loop_exit
      _
    %1580 = vsyncpa [#allocation3], 1
    %s1581 = scalar_lea.sflag [#allocation3], 1
    %1582 = vsyncpa %s1581, 1

</llo_original>
